<compile_context>
chip_gen: v7x
topology: tpu7x:2x2x1
jax: 0.10.0
libtpu: 0.0.40
codegen_flags: <defaults>
</compile_context>

<pallas_src>
import jax
import jax.numpy as jnp
from jax.experimental import pallas as pl
from jax.experimental.pallas import tpu as pltpu


# ----------------------------------------------------------------------------
# Fused Pallas kernel: attention MLP + softmax + weighted sum + agg + score + BCE
# ----------------------------------------------------------------------------
def _ckan_fused_kernel(hr_ref, t_ref, w1_ref, w2_ref, w3_ref,
                       base_u_ref, base_v_ref, y_ref,
                       scores_ref, loss_ref):
    GB, T, D = t_ref.shape
    B = base_u_ref.shape[0]
    G = GB // B
    n_layer = G // 2

    # --- Attention MLP: one flat MXU matmul over all (group, sample, triple)
    # rows.  hr is [G*B*T, 2D] (bf16 or f32), weights are MXU operands,
    # accumulation and activations are f32.
    a1 = jnp.maximum(
        jnp.dot(hr_ref[...], w1_ref[...], preferred_element_type=jnp.float32),
        0.0)                                                   # [GBT, D] f32
    a2 = jnp.maximum(
        jnp.dot(a1.astype(w2_ref.dtype), w2_ref[...],
                preferred_element_type=jnp.float32),
        0.0)                                                   # [GBT, D] f32

    # D -> 1 projection as VPU multiply + lane reduction, grouped per triple
    # set.  Reshape [GBT, D] -> [GB, T, D] is tiling-aligned (T=8 sublanes,
    # D on lanes) -> layout no-op.
    a2_3d = a2.reshape(GB, T, D)
    w3_b = w3_ref[...].reshape(1, 1, D).astype(jnp.float32)
    att_raw = jax.nn.sigmoid(jnp.sum(a2_3d * w3_b, axis=-1))   # [GB, T]

    # Softmax over the triple axis.  att_raw is a sigmoid output in (0, 1), so
    # exp cannot overflow; max-subtraction intentionally skipped.  (If this
    # ever feeds raw logits, re-add the max-subtraction.)
    e = jnp.exp(att_raw)
    denom = jnp.sum(e, axis=-1, keepdims=True)                 # [GB, 1]
    att = e * pl.reciprocal(denom, approx=True)                # [GB, T]

    # Attention-weighted sum of tail embeddings (upcast bf16 -> f32 in-reg).
    t_f32 = t_ref[...].astype(jnp.float32)                     # [GB, T, D]
    weighted = jnp.sum(att[:, :, None] * t_f32, axis=1)        # [GB, D] f32

    # --- 'sum' aggregation across layers (static, sublane-aligned row slices).
    e_u = base_u_ref[...]                                      # [B, D]
    for g in range(n_layer):
        e_u = e_u + weighted[g * B:(g + 1) * B, :]
    e_v = base_v_ref[...]                                      # [B, D]
    for g in range(n_layer, G):
        e_v = e_v + weighted[g * B:(g + 1) * B, :]

    # Prediction: sigmoid(<e_u, e_v>) as a lane-dense [1, B] row
    # (transpose to [D, B], sublane-reduce).
    logits = jnp.sum(e_u.T * e_v.T, axis=0, keepdims=True)     # [1, B]
    p = jax.nn.sigmoid(logits)
    scores_ref[...] = p

    # torch.nn.BCELoss semantics: clamp log terms at -100, mean reduction.
    y = y_ref[...]                                             # [1, B]
    logp = jnp.maximum(jnp.log(p), -100.0)
    log1mp = jnp.maximum(jnp.log(1.0 - p), -100.0)
    per_sample = -(y * logp + (1.0 - y) * log1mp)              # [1, B]
    loss_ref[...] = (jnp.sum(per_sample, axis=-1, keepdims=True) / float(B))


def ckan_fused_call(hr, t3d, w1, w2, w3_row, base_u, base_v, y_row):
    B = base_u.shape[0]
    vmem = pl.BlockSpec(memory_space=pltpu.MemorySpace.VMEM)
    scores, loss = pl.pallas_call(
        _ckan_fused_kernel,
        out_shape=(jax.ShapeDtypeStruct((1, B), jnp.float32),   # lane-dense row
                   jax.ShapeDtypeStruct((1, 1), jnp.float32)),
        in_specs=[vmem] * 8,
        out_specs=(vmem, vmem),
    )(hr, t3d, w1, w2, w3_row, base_u, base_v, y_row)
    return scores[0], loss[0, 0]


# ----------------------------------------------------------------------------
# CKAN forward (agg='sum'); embedding gathers + layout plumbing stay in JAX
# ----------------------------------------------------------------------------
def ckan_forward(params, items, labels, user_triples, item_triples,
                 n_layer, use_bf16_mxu=True):
    del n_layer  # derivable from the stacked triple lists
    ent = params['entity_emb']
    rel = params['relation_emb']
    w1, w2, w3_row = params['w1'], params['w2'], params['w3_row']

    # Stack all (user layers ++ item layers) triples -> one gather each.
    h_idx = jnp.stack(user_triples['h'] + item_triples['h'], axis=0)  # [G,B,T]
    r_idx = jnp.stack(user_triples['r'] + item_triples['r'], axis=0)
    t_idx = jnp.stack(user_triples['t'] + item_triples['t'], axis=0)
    G, B, T = h_idx.shape
    D = ent.shape[1]

    # TODO(synk): fold these gathers into the kernel (scalar-prefetched index
    # arrays + manual make_async_copy row gathers from HBM tables) to cut the
    # [G,B,T,D] HBM write+read at production scale.
    h_emb = jnp.take(ent, h_idx, axis=0)                              # [G,B,T,D]
    r_emb = jnp.take(rel, r_idx, axis=0)
    t_emb = jnp.take(ent, t_idx, axis=0)

    # Pre-shape in the wrapper (free layout plumbing): concatenated h||r MXU
    # operand as a flat [G*B*T, 2D] slab; tails as [G*B, T, D].
    hr = jnp.concatenate([h_emb, r_emb], axis=-1).reshape(G * B * T, 2 * D)
    t3d = t_emb.reshape(G * B, T, D)

    mxu_dtype = jnp.bfloat16 if use_bf16_mxu else jnp.float32
    hr = hr.astype(mxu_dtype)
    t3d = t3d.astype(mxu_dtype)          # halves the largest HBM->VMEM stream
    w1c = w1.astype(mxu_dtype)
    w2c = w2.astype(mxu_dtype)

    # Base ('layer-0') embeddings — cheap gathers + means, kept in plain JAX.
    base_u = jnp.take(ent, user_triples['h'][0], axis=0).mean(axis=1)  # [B, D]
    # agg == 'sum': item origin embedding + item layer-0 head mean.
    base_v = (jnp.take(ent, items, axis=0)
              + jnp.take(ent, item_triples['h'][0], axis=0).mean(axis=1))

    y_row = labels.reshape(1, B).astype(jnp.float32)
    scores, loss = ckan_fused_call(hr, t3d, w1c, w2c, w3_row,
                                   base_u, base_v, y_row)
    return loss, scores


# Pure-JAX reference (mirrors the PyTorch semantics) for correctness check.
def ckan_forward_ref(params, items, labels, user_triples, item_triples, n_layer):
    ent, rel = params['entity_emb'], params['relation_emb']
    w1, w2, w3_row = params['w1'], params['w2'], params['w3_row']

    def attn(h, r, t):
        x = jnp.concatenate([h, r], axis=-1)
        a1 = jax.nn.relu(x @ w1)
        a2 = jax.nn.relu(a1 @ w2)
        att = jax.nn.sigmoid(jnp.sum(a2 * w3_row, axis=-1))       # [B, T]
        att = jax.nn.softmax(att, axis=-1)
        return jnp.sum(att[..., None] * t, axis=1)

    u_embs = [jnp.take(ent, user_triples['h'][0], axis=0).mean(axis=1)]
    for i in range(n_layer):
        u_embs.append(attn(jnp.take(ent, user_triples['h'][i], axis=0),
                           jnp.take(rel, user_triples['r'][i], axis=0),
                           jnp.take(ent, user_triples['t'][i], axis=0)))
    v_embs = [jnp.take(ent, items, axis=0)]
    for i in range(n_layer):
        v_embs.append(attn(jnp.take(ent, item_triples['h'][i], axis=0),
                           jnp.take(rel, item_triples['r'][i], axis=0),
                           jnp.take(ent, item_triples['t'][i], axis=0)))
    v_embs.append(jnp.take(ent, item_triples['h'][0], axis=0).mean(axis=1))

    e_u = sum(u_embs[1:], u_embs[0])
    e_v = sum(v_embs[1:], v_embs[0])
    p = jax.nn.sigmoid(jnp.sum(e_u * e_v, axis=-1))
    logp = jnp.maximum(jnp.log(p), -100.0)
    log1mp = jnp.maximum(jnp.log(1.0 - p), -100.0)
    loss = jnp.mean(-(labels * logp + (1.0 - labels) * log1mp))
    return loss, p


def xavier_uniform(key, shape):
    fan_out, fan_in = shape[0], shape[1]
    bound = (6.0 / (fan_in + fan_out)) ** 0.5
    return jax.random.uniform(key, shape, jnp.float32, -bound, bound)


if __name__ == "__main__":
    # Small synthetic config (mirrors opt / model_define_args); agg == 'sum'.
    B = 8            # batch size
    T = 8            # triples per sample per layer
    D = 32           # opt.dim
    N_LAYER = 2      # opt.n_layer
    N_ENTITY = 100
    N_RELATION = 20

    key = jax.random.PRNGKey(0)
    keys = jax.random.split(key, 16)

    # Parameters (xavier-uniform init; torch Linear weight is [out, in]).
    entity_emb = xavier_uniform(keys[0], (N_ENTITY, D))
    relation_emb = xavier_uniform(keys[1], (N_RELATION, D))
    W1 = xavier_uniform(keys[2], (D, 2 * D))     # attention[0]: Linear(2D -> D)
    W2 = xavier_uniform(keys[3], (D, D))         # attention[2]: Linear(D -> D)
    W3 = xavier_uniform(keys[4], (1, D))         # attention[4]: Linear(D -> 1)
    params = {
        'entity_emb': entity_emb,
        'relation_emb': relation_emb,
        # pre-transposed so the kernel computes x @ W; W1 kept fused ([2D, D])
        # and fed with a pre-concatenated h||r operand.
        'w1': W1.T,                              # [2D, D]
        'w2': W2.T,                              # [D, D]
        'w3_row': W3,                            # [1, D] (lane-dense row)
    }

    # Synthetic interaction data: data[:,0]=user, data[:,1]=item, data[:,2]=label
    items = jax.random.randint(keys[5], (B,), 0, N_ENTITY, dtype=jnp.int32)
    labels = jax.random.bernoulli(keys[6], 0.5, (B,)).astype(jnp.float32)

    # Synthetic pre-sampled triple sets (host-side _get_triple_tensor output):
    # one (h, r, t) index tensor of shape [B, T] per layer.
    def make_triples(k):
        ks = jax.random.split(k, 3 * N_LAYER)
        return {
            'h': [jax.random.randint(ks[3 * i + 0], (B, T), 0, N_ENTITY, dtype=jnp.int32)
                  for i in range(N_LAYER)],
            'r': [jax.random.randint(ks[3 * i + 1], (B, T), 0, N_RELATION, dtype=jnp.int32)
                  for i in range(N_LAYER)],
            't': [jax.random.randint(ks[3 * i + 2], (B, T), 0, N_ENTITY, dtype=jnp.int32)
                  for i in range(N_LAYER)],
        }

    user_triples = make_triples(keys[7])
    item_triples = make_triples(keys[8])

    fwd = jax.jit(ckan_forward, static_argnames=('n_layer', 'use_bf16_mxu'))

    # Pure-JAX reference (f32).
    loss_ref, scores_ref = ckan_forward_ref(params, items, labels,
                                            user_triples, item_triples, N_LAYER)

    # --- f32 MXU path: tight-ish tolerance (approx reciprocal in softmax) ---
    loss32, scores32 = fwd(params, items, labels, user_triples, item_triples,
                           n_layer=N_LAYER, use_bf16_mxu=False)
    loss32 = jax.block_until_ready(loss32)
    scores32 = jax.block_until_ready(scores32)
    assert jnp.allclose(scores32, scores_ref, rtol=5e-3, atol=5e-3), "f32 scores mismatch"
    assert jnp.allclose(loss32, loss_ref, rtol=2e-2, atol=5e-3), "f32 loss mismatch"

    # --- bf16 MXU path (default perf path): looser tolerance ---
    loss16, scores16 = fwd(params, items, labels, user_triples, item_triples,
                           n_layer=N_LAYER, use_bf16_mxu=True)
    loss16 = jax.block_until_ready(loss16)
    scores16 = jax.block_until_ready(scores16)
    assert jnp.allclose(scores16, scores_ref, rtol=3e-2, atol=3e-2), "bf16 scores mismatch"
    assert jnp.allclose(loss16, loss_ref, rtol=1e-1, atol=3e-2), "bf16 loss mismatch"

    print("KERNEL_OK")
</pallas_src>

<mosaic_0001>
module attributes {stable_mosaic.version = 11 : i64} {
  func.func @_ckan_fused_kernel(%arg0: memref<256x64xf32, #tpu.memory_space<vmem>>, %arg1: memref<32x8x32xf32, #tpu.memory_space<vmem>>, %arg2: memref<64x32xf32, #tpu.memory_space<vmem>>, %arg3: memref<32x32xf32, #tpu.memory_space<vmem>>, %arg4: memref<1x32xf32, #tpu.memory_space<vmem>>, %arg5: memref<8x32xf32, #tpu.memory_space<vmem>>, %arg6: memref<8x32xf32, #tpu.memory_space<vmem>>, %arg7: memref<1x8xf32, #tpu.memory_space<vmem>>, %arg8: memref<1x8xf32, #tpu.memory_space<vmem>>, %arg9: memref<1x1xf32, #tpu.memory_space<vmem>>) attributes {dimension_semantics = [], scalar_prefetch = 0 : i64, scratch_operands = 0 : i64, tpu.core_type = #tpu.core_type<tc>} {
    %c0 = arith.constant 0 : index
    %c0_0 = arith.constant 0 : index
    %0 = vector.load %arg0[%c0, %c0_0] : memref<256x64xf32, #tpu.memory_space<vmem>>, vector<256x64xf32>
    %c0_1 = arith.constant 0 : index
    %c0_2 = arith.constant 0 : index
    %1 = vector.load %arg2[%c0_1, %c0_2] : memref<64x32xf32, #tpu.memory_space<vmem>>, vector<64x32xf32>
    %cst = arith.constant dense<0.000000e+00> : vector<256x32xf32>
    %2 = tpu.matmul %0, %1, %cst {dimension_numbers = #tpu.dot_dimension_numbers<[1], [0], [0], [1], [0, 0, 1, 1], [], []>} : vector<256x64xf32>, vector<64x32xf32>, vector<256x32xf32> -> vector<256x32xf32>
    %cst_3 = arith.constant 0.000000e+00 : f32
    %3 = vector.broadcast %cst_3 : f32 to vector<256x32xf32>
    %4 = arith.maximumf %2, %3 : vector<256x32xf32>
    %c0_4 = arith.constant 0 : index
    %c0_5 = arith.constant 0 : index
    %5 = vector.load %arg3[%c0_4, %c0_5] : memref<32x32xf32, #tpu.memory_space<vmem>>, vector<32x32xf32>
    %cst_6 = arith.constant dense<0.000000e+00> : vector<256x32xf32>
    %6 = tpu.matmul %4, %5, %cst_6 {dimension_numbers = #tpu.dot_dimension_numbers<[1], [0], [0], [1], [0, 0, 1, 1], [], []>} : vector<256x32xf32>, vector<32x32xf32>, vector<256x32xf32> -> vector<256x32xf32>
    %cst_7 = arith.constant 0.000000e+00 : f32
    %7 = vector.broadcast %cst_7 : f32 to vector<256x32xf32>
    %8 = arith.maximumf %6, %7 : vector<256x32xf32>
    %9 = vector.shape_cast %8 : vector<256x32xf32> to vector<32x8x32xf32>
    %c0_8 = arith.constant 0 : index
    %c0_9 = arith.constant 0 : index
    %10 = vector.load %arg4[%c0_8, %c0_9] : memref<1x32xf32, #tpu.memory_space<vmem>>, vector<1x32xf32>
    %11 = vector.shape_cast %10 : vector<1x32xf32> to vector<1x1x32xf32>
    %12 = vector.broadcast %11 : vector<1x1x32xf32> to vector<32x8x32xf32>
    %13 = arith.mulf %9, %12 : vector<32x8x32xf32>
    %cst_10 = arith.constant dense<0.000000e+00> : vector<32x8xf32>
    %14 = vector.multi_reduction <add>, %13, %cst_10 [2] : vector<32x8x32xf32> to vector<32x8xf32>
    %15 = arith.negf %14 : vector<32x8xf32>
    %16 = math.exp %15 : vector<32x8xf32>
    %cst_11 = arith.constant 1.000000e+00 : f32
    %17 = vector.broadcast %cst_11 : f32 to vector<32x8xf32>
    %18 = arith.addf %17, %16 : vector<32x8xf32>
    %19 = arith.divf %17, %18 : vector<32x8xf32>
    %20 = math.exp %19 : vector<32x8xf32>
    %cst_12 = arith.constant dense<0.000000e+00> : vector<32xf32>
    %21 = vector.multi_reduction <add>, %20, %cst_12 [1] : vector<32x8xf32> to vector<32xf32>
    %22 = vector.shape_cast %21 : vector<32xf32> to vector<32x1xf32>
    %23 = tpu.reciprocal %22 {approx = true} : vector<32x1xf32> -> vector<32x1xf32>
    %24 = vector.broadcast %23 : vector<32x1xf32> to vector<32x8xf32>
    %25 = arith.mulf %20, %24 : vector<32x8xf32>
    %c0_13 = arith.constant 0 : index
    %c0_14 = arith.constant 0 : index
    %c0_15 = arith.constant 0 : index
    %26 = vector.load %arg1[%c0_13, %c0_14, %c0_15] : memref<32x8x32xf32, #tpu.memory_space<vmem>>, vector<32x8x32xf32>
    %27 = vector.shape_cast %25 : vector<32x8xf32> to vector<32x8x1xf32>
    %28 = vector.broadcast %27 : vector<32x8x1xf32> to vector<32x8x32xf32>
    %29 = arith.mulf %28, %26 : vector<32x8x32xf32>
    %cst_16 = arith.constant dense<0.000000e+00> : vector<32x32xf32>
    %30 = vector.multi_reduction <add>, %29, %cst_16 [1] : vector<32x8x32xf32> to vector<32x32xf32>
    %c0_17 = arith.constant 0 : index
    %c0_18 = arith.constant 0 : index
    %31 = vector.load %arg5[%c0_17, %c0_18] : memref<8x32xf32, #tpu.memory_space<vmem>>, vector<8x32xf32>
    %32 = vector.extract_strided_slice %30 {offsets = [0, 0], sizes = [8, 32], strides = [1, 1]} : vector<32x32xf32> to vector<8x32xf32>
    %33 = arith.addf %31, %32 : vector<8x32xf32>
    %34 = vector.extract_strided_slice %30 {offsets = [8, 0], sizes = [8, 32], strides = [1, 1]} : vector<32x32xf32> to vector<8x32xf32>
    %35 = arith.addf %33, %34 : vector<8x32xf32>
    %c0_19 = arith.constant 0 : index
    %c0_20 = arith.constant 0 : index
    %36 = vector.load %arg6[%c0_19, %c0_20] : memref<8x32xf32, #tpu.memory_space<vmem>>, vector<8x32xf32>
    %37 = vector.extract_strided_slice %30 {offsets = [16, 0], sizes = [8, 32], strides = [1, 1]} : vector<32x32xf32> to vector<8x32xf32>
    %38 = arith.addf %36, %37 : vector<8x32xf32>
    %39 = vector.extract_strided_slice %30 {offsets = [24, 0], sizes = [8, 32], strides = [1, 1]} : vector<32x32xf32> to vector<8x32xf32>
    %40 = arith.addf %38, %39 : vector<8x32xf32>
    %41 = tpu.transpose %35, [1, 0] : vector<8x32xf32> -> vector<32x8xf32>
    %42 = tpu.transpose %40, [1, 0] : vector<8x32xf32> -> vector<32x8xf32>
    %43 = arith.mulf %41, %42 : vector<32x8xf32>
    %cst_21 = arith.constant dense<0.000000e+00> : vector<8xf32>
    %44 = vector.multi_reduction <add>, %43, %cst_21 [0] : vector<32x8xf32> to vector<8xf32>
    %45 = vector.shape_cast %44 : vector<8xf32> to vector<1x8xf32>
    %46 = arith.negf %45 : vector<1x8xf32>
    %47 = math.exp %46 : vector<1x8xf32>
    %cst_22 = arith.constant 1.000000e+00 : f32
    %48 = vector.broadcast %cst_22 : f32 to vector<1x8xf32>
    %49 = arith.addf %48, %47 : vector<1x8xf32>
    %50 = arith.divf %48, %49 : vector<1x8xf32>
    %c0_23 = arith.constant 0 : index
    %c0_24 = arith.constant 0 : index
    %51 = vector.load %arg8[%c0_23, %c0_24] : memref<1x8xf32, #tpu.memory_space<vmem>>, vector<1x8xf32>
    tpu.vector_store %arg8[%c0_23, %c0_24], %50 {strides = array<i32>} : memref<1x8xf32, #tpu.memory_space<vmem>>, vector<1x8xf32>,
    %c0_25 = arith.constant 0 : index
    %c0_26 = arith.constant 0 : index
    %52 = vector.load %arg7[%c0_25, %c0_26] : memref<1x8xf32, #tpu.memory_space<vmem>>, vector<1x8xf32>
    %53 = math.log %50 : vector<1x8xf32>
    %cst_27 = arith.constant -1.000000e+02 : f32
    %54 = vector.broadcast %cst_27 : f32 to vector<1x8xf32>
    %55 = arith.maximumf %53, %54 : vector<1x8xf32>
    %cst_28 = arith.constant 1.000000e+00 : f32
    %56 = vector.broadcast %cst_28 : f32 to vector<1x8xf32>
    %57 = arith.subf %56, %50 : vector<1x8xf32>
    %58 = math.log %57 : vector<1x8xf32>
    %cst_29 = arith.constant -1.000000e+02 : f32
    %59 = vector.broadcast %cst_29 : f32 to vector<1x8xf32>
    %60 = arith.maximumf %58, %59 : vector<1x8xf32>
    %61 = arith.mulf %52, %55 : vector<1x8xf32>
    %cst_30 = arith.constant 1.000000e+00 : f32
    %62 = vector.broadcast %cst_30 : f32 to vector<1x8xf32>
    %63 = arith.subf %62, %52 : vector<1x8xf32>
    %64 = arith.mulf %63, %60 : vector<1x8xf32>
    %65 = arith.addf %61, %64 : vector<1x8xf32>
    %cst_31 = arith.constant 0.000000e+00 : f32
    %66 = vector.broadcast %cst_31 : f32 to vector<1x8xf32>
    %67 = arith.subf %66, %65 : vector<1x8xf32>
    %cst_32 = arith.constant dense<0.000000e+00> : vector<1xf32>
    %68 = vector.multi_reduction <add>, %67, %cst_32 [1] : vector<1x8xf32> to vector<1xf32>
    %69 = vector.shape_cast %68 : vector<1xf32> to vector<1x1xf32>
    %cst_33 = arith.constant 8.000000e+00 : f32
    %70 = vector.broadcast %cst_33 : f32 to vector<1x1xf32>
    %71 = arith.divf %69, %70 : vector<1x1xf32>
    %c0_34 = arith.constant 0 : index
    %c0_35 = arith.constant 0 : index
    %72 = vector.load %arg9[%c0_34, %c0_35] : memref<1x1xf32, #tpu.memory_space<vmem>>, vector<1x1xf32>
    tpu.vector_store %arg9[%c0_34, %c0_35], %71 {strides = array<i32>} : memref<1x1xf32, #tpu.memory_space<vmem>>, vector<1x1xf32>,
    return
  }
}

</mosaic_0001>

<llo_original>
// kernel: ckan_forward.1
$region0: #{ckan_forward.1}
  #allocation0 [shape = 'u32[]', space=smem, size = 0x4, offset = 0x4, fixed_abs, tag = 'smem constant byte address 0x4 - core index']
  #allocation1 [shape = 'u32[144,128]{1,0:T(1,128)}', space=vmem, size = 0x12000, scoped, tag = 'internal scratch']
  %s0 = inlined_call_operand.vmem [shape: f32[256,64], index: 0, kind: input, shape index: {}]
  %s1 = inlined_call_operand.vmem [shape: f32[32,8,32], index: 1, kind: input, shape index: {}]
  %s2 = inlined_call_operand.vmem [shape: f32[64,32], index: 2, kind: input, shape index: {}]
  %s3 = inlined_call_operand.vmem [shape: f32[32,32], index: 3, kind: input, shape index: {}]
  %s4 = inlined_call_operand.vmem [shape: f32[1,32], index: 4, kind: input, shape index: {}]
  %s5 = inlined_call_operand.vmem [shape: f32[8,32], index: 5, kind: input, shape index: {}]
  %s6 = inlined_call_operand.vmem [shape: f32[8,32], index: 6, kind: input, shape index: {}]
  %s7 = inlined_call_operand.vmem [shape: f32[1,8], index: 7, kind: input, shape index: {}]
  %s8 = inlined_call_operand.hbm [shape: f32[1,8], index: 8, kind: output, shape index: {0}]
  %s9 = inlined_call_operand.hbm [shape: f32[1,1], index: 9, kind: output, shape index: {1}]
  %10 = xla_tuple %s8, %s9
  %s11 = sld [smem:[#allocation0]]
  $region50: #{ckan_forward.1} parent=0
    _
  %s13 = ssub.s32 1, %s11
  %s14 = scalar_select 0, %s13, %s11
  $region1: #{ckan_forward.1} parent=0
    #allocation2 [shape = 'u8[512]{0}', space=vmem, size = 0x400, scoped, tag = 'output window, operand 0, single buffered']
    #allocation3 [shape = 's32[1]{0}', space=sflag, size = 0x4, scoped, tag = 'scoped memory for ckan_forward.1']
    #allocation4 [shape = 'u8[512]{0}', space=vmem, size = 0x400, scoped, tag = 'output window, operand 1, single buffered']
    #allocation5 [shape = 's32[1]{0}', space=sflag, size = 0x4, scoped, tag = 'scoped memory for ckan_forward.1']
    %15 = vsyncpa [#allocation3], 0
    %16 = vsyncpa [#allocation5], 0
    // Predicated region
    $region2: #{ckan_forward.1} parent=1 // pred_check
      _
    $region3: #{ckan_forward.1} parent=1 // pred_check_branch
      %18 = sbr.rel (0) target = $region5
    $region4: #{ckan_forward.1} parent=1 // pred_region
      _
    $region5: #{ckan_forward.1} parent=1 // pred_fallthru
      _
    // Predicated region
    $region6: #{ckan_forward.1} parent=1 // pred_check
      _
    $region7: #{ckan_forward.1} parent=1 // pred_check_branch
      %20 = sbr.rel (0) target = $region9
    $region8: #{ckan_forward.1} parent=1 // pred_region
      _
    $region9: #{ckan_forward.1} parent=1 // pred_fallthru
      _
    // Predicated region
    $region10: #{ckan_forward.1} parent=1 // pred_check
      _
    $region11: #{ckan_forward.1} parent=1 // pred_check_branch
      %22 = sbr.rel (0) target = $region13
    $region12: #{ckan_forward.1} parent=1 // pred_region
      _
    $region13: #{ckan_forward.1} parent=1 // pred_fallthru
      _
    // Predicated region
    $region14: #{ckan_forward.1} parent=1 // pred_check
      _
    $region15: #{ckan_forward.1} parent=1 // pred_check_branch
      %24 = sbr.rel (0) target = $region17
    $region16: #{ckan_forward.1} parent=1 // pred_region
      _
    $region17: #{ckan_forward.1} parent=1 // pred_fallthru
      _
    // Predicated region
    $region18: #{ckan_forward.1} parent=1 // pred_check
      _
    $region19: #{ckan_forward.1} parent=1 // pred_check_branch
      %26 = sbr.rel (0) target = $region21
    $region20: #{ckan_forward.1} parent=1 // pred_region
      _
    $region21: #{ckan_forward.1} parent=1 // pred_fallthru
      _
    // Predicated region
    $region22: #{ckan_forward.1} parent=1 // pred_check
      _
    $region23: #{ckan_forward.1} parent=1 // pred_check_branch
      %28 = sbr.rel (0) target = $region25
    $region24: #{ckan_forward.1} parent=1 // pred_region
      _
    $region25: #{ckan_forward.1} parent=1 // pred_fallthru
      _
    // Predicated region
    $region26: #{ckan_forward.1} parent=1 // pred_check
      _
    $region27: #{ckan_forward.1} parent=1 // pred_check_branch
      %30 = sbr.rel (0) target = $region29
    $region28: #{ckan_forward.1} parent=1 // pred_region
      _
    $region29: #{ckan_forward.1} parent=1 // pred_fallthru
      _
    // Predicated region
    $region30: #{ckan_forward.1} parent=1 // pred_check
      _
    $region31: #{ckan_forward.1} parent=1 // pred_check_branch
      %32 = sbr.rel (0) target = $region33
    $region32: #{ckan_forward.1} parent=1 // pred_region
      _
    $region33: #{ckan_forward.1} parent=1 // pred_fallthru
      _
    %v33 = vld [vmem:[%s0] sm:$0xff]
    %v34 = vld [vmem:[%s0 + $0x8] sm:$0xff]
    %v35 = vld [vmem:[%s0 + $0x10] sm:$0xff]
    %v36 = vld [vmem:[%s0 + $0x18] sm:$0xff]
    %v37 = vld [vmem:[%s0 + $0x20] sm:$0xff]
    %v38 = vld [vmem:[%s0 + $0x28] sm:$0xff]
    %v39 = vld [vmem:[%s0 + $0x30] sm:$0xff]
    %v40 = vld [vmem:[%s0 + $0x38] sm:$0xff]
    %v41 = vld [vmem:[%s0 + $0x40] sm:$0xff]
    %v42 = vld [vmem:[%s0 + $0x48] sm:$0xff]
    %v43 = vld [vmem:[%s0 + $0x50] sm:$0xff]
    %v44 = vld [vmem:[%s0 + $0x58] sm:$0xff]
    %v45 = vld [vmem:[%s0 + $0x60] sm:$0xff]
    %v46 = vld [vmem:[%s0 + $0x68] sm:$0xff]
    %v47 = vld [vmem:[%s0 + $0x70] sm:$0xff]
    %v48 = vld [vmem:[%s0 + $0x78] sm:$0xff]
    %v49 = vld [vmem:[%s0 + $0x80] sm:$0xff]
    %v50 = vld [vmem:[%s0 + $0x88] sm:$0xff]
    %v51 = vld [vmem:[%s0 + $0x90] sm:$0xff]
    %v52 = vld [vmem:[%s0 + $0x98] sm:$0xff]
    %v53 = vld [vmem:[%s0 + $0xa0] sm:$0xff]
    %v54 = vld [vmem:[%s0 + $0xa8] sm:$0xff]
    %v55 = vld [vmem:[%s0 + $0xb0] sm:$0xff]
    %v56 = vld [vmem:[%s0 + $0xb8] sm:$0xff]
    %v57 = vld [vmem:[%s0 + $0xc0] sm:$0xff]
    %v58 = vld [vmem:[%s0 + $0xc8] sm:$0xff]
    %v59 = vld [vmem:[%s0 + $0xd0] sm:$0xff]
    %v60 = vld [vmem:[%s0 + $0xd8] sm:$0xff]
    %v61 = vld [vmem:[%s0 + $0xe0] sm:$0xff]
    %v62 = vld [vmem:[%s0 + $0xe8] sm:$0xff]
    %v63 = vld [vmem:[%s0 + $0xf0] sm:$0xff]
    %v64 = vld [vmem:[%s0 + $0xf8] sm:$0xff]
    %v65 = vld [vmem:[%s2] sm:$0xff]
    %v66 = vld [vmem:[%s2 + $0x8] sm:$0xff]
    %v67 = vld [vmem:[%s2 + $0x10] sm:$0xff]
    %v68 = vld [vmem:[%s2 + $0x18] sm:$0xff]
    %v69 = vld [vmem:[%s2 + $0x20] sm:$0xff]
    %v70 = vld [vmem:[%s2 + $0x28] sm:$0xff]
    %v71 = vld [vmem:[%s2 + $0x30] sm:$0xff]
    %v72 = vld [vmem:[%s2 + $0x38] sm:$0xff]
    %vm73 = vcmask 523264
    %v75 = vsel %vm73, %v33, 0
    %v78 = vsel %vm73, %v34, 0
    %v81 = vsel %vm73, %v35, 0
    %v84 = vsel %vm73, %v36, 0
    %v87 = vsel %vm73, %v37, 0
    %v90 = vsel %vm73, %v38, 0
    %v93 = vsel %vm73, %v39, 0
    %v96 = vsel %vm73, %v40, 0
    %v99 = vsel %vm73, %v41, 0
    %v102 = vsel %vm73, %v42, 0
    %v105 = vsel %vm73, %v43, 0
    %v108 = vsel %vm73, %v44, 0
    %v111 = vsel %vm73, %v45, 0
    %v114 = vsel %vm73, %v46, 0
    %v117 = vsel %vm73, %v47, 0
    %v120 = vsel %vm73, %v48, 0
    %v123 = vsel %vm73, %v49, 0
    %v126 = vsel %vm73, %v50, 0
    %v129 = vsel %vm73, %v51, 0
    %v132 = vsel %vm73, %v52, 0
    %v135 = vsel %vm73, %v53, 0
    %v138 = vsel %vm73, %v54, 0
    %v141 = vsel %vm73, %v55, 0
    %v144 = vsel %vm73, %v56, 0
    %v147 = vsel %vm73, %v57, 0
    %v150 = vsel %vm73, %v58, 0
    %v153 = vsel %vm73, %v59, 0
    %v156 = vsel %vm73, %v60, 0
    %v159 = vsel %vm73, %v61, 0
    %v162 = vsel %vm73, %v62, 0
    %v165 = vsel %vm73, %v63, 0
    %v168 = vsel %vm73, %v64, 0
    %170 = vmatprep.subr.mxu0 0.0
    %171 = vmatpush1.msra.mxu0 %v65
    %172 = vmatprep.subr.mxu0 0.0
    %173 = vmatpush1.msra.mxu0 %v66
    %174 = vmatprep.subr.mxu0 0.0
    %175 = vmatpush1.msra.mxu0 %v67
    %176 = vmatprep.subr.mxu0 0.0
    %177 = vmatpush1.msra.mxu0 %v68
    %178 = vmatprep.subr.mxu0 0.0
    %179 = vmatpush1.msra.mxu0 %v69
    %180 = vmatprep.subr.mxu0 0.0
    %181 = vmatpush1.msra.mxu0 %v70
    %182 = vmatprep.subr.mxu0 0.0
    %183 = vmatpush1.msra.mxu0 %v71
    %184 = vmatprep.subr.mxu0 0.0
    %185 = vmatpush1.msra.mxu0 %v72
    %186 = vmatprep.subr.mxu0 0.0
    %187 = vmatpush1.msra.mxu0 0.0
    %188 = vmatprep.subr.mxu0 0.0
    %189 = vmatpush1.msra.mxu0 0.0
    %190 = vmatprep.subr.mxu0 0.0
    %191 = vmatpush1.msra.mxu0 0.0
    %192 = vmatprep.subr.mxu0 0.0
    %193 = vmatpush1.msra.mxu0 0.0
    %194 = vmatprep.subr.mxu0 0.0
    %195 = vmatpush1.msra.mxu0 0.0
    %196 = vmatprep.subr.mxu0 0.0
    %197 = vmatpush1.msra.mxu0 0.0
    %198 = vmatprep.subr.mxu0 0.0
    %199 = vmatpush1.msra.mxu0 0.0
    %200 = vmatprep.subr.mxu0 0.0
    %201 = vmatpush1.msra.mxu0 0.0
    %202 = vmatprep.subr.mxu0 0.0
    %203 = vmatpush1.msra.mxu0 0.0
    %204 = vmatprep.subr.mxu0 0.0
    %205 = vmatpush1.msra.mxu0 0.0
    %206 = vmatprep.subr.mxu0 0.0
    %207 = vmatpush1.msra.mxu0 0.0
    %208 = vmatprep.subr.mxu0 0.0
    %209 = vmatpush1.msra.mxu0 0.0
    %210 = vmatprep.subr.mxu0 0.0
    %211 = vmatpush1.msra.mxu0 0.0
    %212 = vmatprep.subr.mxu0 0.0
    %213 = vmatpush1.msra.mxu0 0.0
    %214 = vmatprep.subr.mxu0 0.0
    %215 = vmatpush1.msra.mxu0 0.0
    %216 = vmatprep.subr.mxu0 0.0
    %217 = vmatpush1.msra.mxu0 0.0
    %218 = vmatprep.subr.mxu0 0.0
    %219 = vmatpush1.msra.mxu0 0.0
    %220 = vmatprep.subr.mxu0 0.0
    %221 = vmatpush1.msra.mxu0 0.0
    %222 = vmatprep.subr.mxu0 0.0
    %223 = vmatpush1.msra.mxu0 0.0
    %224 = vmatprep.subr.mxu0 0.0
    %225 = vmatpush1.msra.mxu0 0.0
    %226 = vmatprep.subr.mxu0 0.0
    %227 = vmatpush1.msra.mxu0 0.0
    %228 = vmatprep.subr.mxu0 0.0
    %229 = vmatpush1.msra.mxu0 0.0
    %230 = vmatprep.subr.mxu0 0.0
    %231 = vmatpush1.msra.mxu0 0.0
    %232 = vmatprep.subr.mxu0 0.0
    %233 = vmatpush1.msra.mxu0 0.0
    %234 = vmatprep.mubr.f32.mxu0 0.0
    %235 = vmatmul.mubr.f32.gmra.mrb[0].mxu0 %v75
    %v236 = vpop.f32.mrb[0].mxu0
    %v237 = vadd.f32 0.0, %v236
    %v238 = vpop.f32.mrb[0].mxu0
    %239 = vmatprep.mubr.f32.mxu0 0.0
    %240 = vmatmul.mubr.f32.gmra.mrb[0].mxu0 %v78
    %v241 = vpop.f32.mrb[0].mxu0
    %v242 = vadd.f32 0.0, %v241
    %v243 = vpop.f32.mrb[0].mxu0
    %244 = vmatprep.mubr.f32.mxu0 0.0
    %245 = vmatmul.mubr.f32.gmra.mrb[0].mxu0 %v81
    %v246 = vpop.f32.mrb[0].mxu0
    %v247 = vadd.f32 0.0, %v246
    %v248 = vpop.f32.mrb[0].mxu0
    %249 = vmatprep.mubr.f32.mxu0 0.0
    %250 = vmatmul.mubr.f32.gmra.mrb[0].mxu0 %v84
    %v251 = vpop.f32.mrb[0].mxu0
    %v252 = vadd.f32 0.0, %v251
    %v253 = vpop.f32.mrb[0].mxu0
    %254 = vmatprep.mubr.f32.mxu0 0.0
    %255 = vmatmul.mubr.f32.gmra.mrb[0].mxu0 %v87
    %v256 = vpop.f32.mrb[0].mxu0
    %v257 = vadd.f32 0.0, %v256
    %v258 = vpop.f32.mrb[0].mxu0
    %259 = vmatprep.mubr.f32.mxu0 0.0
    %260 = vmatmul.mubr.f32.gmra.mrb[0].mxu0 %v90
    %v261 = vpop.f32.mrb[0].mxu0
    %v262 = vadd.f32 0.0, %v261
    %v263 = vpop.f32.mrb[0].mxu0
    %264 = vmatprep.mubr.f32.mxu0 0.0
    %265 = vmatmul.mubr.f32.gmra.mrb[0].mxu0 %v93
    %v266 = vpop.f32.mrb[0].mxu0
    %v267 = vadd.f32 0.0, %v266
    %v268 = vpop.f32.mrb[0].mxu0
    %269 = vmatprep.mubr.f32.mxu0 0.0
    %270 = vmatmul.mubr.f32.gmra.mrb[0].mxu0 %v96
    %v271 = vpop.f32.mrb[0].mxu0
    %v272 = vadd.f32 0.0, %v271
    %v273 = vpop.f32.mrb[0].mxu0
    %274 = vmatprep.mubr.f32.mxu0 0.0
    %275 = vmatmul.mubr.f32.gmra.mrb[0].mxu0 %v99
    %v276 = vpop.f32.mrb[0].mxu0
    %v277 = vadd.f32 0.0, %v276
    %v278 = vpop.f32.mrb[0].mxu0
    %279 = vmatprep.mubr.f32.mxu0 0.0
    %280 = vmatmul.mubr.f32.gmra.mrb[0].mxu0 %v102
    %v281 = vpop.f32.mrb[0].mxu0
    %v282 = vadd.f32 0.0, %v281
    %v283 = vpop.f32.mrb[0].mxu0
    %284 = vmatprep.mubr.f32.mxu0 0.0
    %285 = vmatmul.mubr.f32.gmra.mrb[0].mxu0 %v105
    %v286 = vpop.f32.mrb[0].mxu0
    %v287 = vadd.f32 0.0, %v286
    %v288 = vpop.f32.mrb[0].mxu0
    %289 = vmatprep.mubr.f32.mxu0 0.0
    %290 = vmatmul.mubr.f32.gmra.mrb[0].mxu0 %v108
    %v291 = vpop.f32.mrb[0].mxu0
    %v292 = vadd.f32 0.0, %v291
    %v293 = vpop.f32.mrb[0].mxu0
    %294 = vmatprep.mubr.f32.mxu0 0.0
    %295 = vmatmul.mubr.f32.gmra.mrb[0].mxu0 %v111
    %v296 = vpop.f32.mrb[0].mxu0
    %v297 = vadd.f32 0.0, %v296
    %v298 = vpop.f32.mrb[0].mxu0
    %299 = vmatprep.mubr.f32.mxu0 0.0
    %300 = vmatmul.mubr.f32.gmra.mrb[0].mxu0 %v114
    %v301 = vpop.f32.mrb[0].mxu0
    %v302 = vadd.f32 0.0, %v301
    %v303 = vpop.f32.mrb[0].mxu0
    %304 = vmatprep.mubr.f32.mxu0 0.0
    %305 = vmatmul.mubr.f32.gmra.mrb[0].mxu0 %v117
    %v306 = vpop.f32.mrb[0].mxu0
    %v307 = vadd.f32 0.0, %v306
    %v308 = vpop.f32.mrb[0].mxu0
    %309 = vmatprep.mubr.f32.mxu0 0.0
    %310 = vmatmul.mubr.f32.gmra.mrb[0].mxu0 %v120
    %v311 = vpop.f32.mrb[0].mxu0
    %v312 = vadd.f32 0.0, %v311
    %v313 = vpop.f32.mrb[0].mxu0
    %314 = vmatprep.mubr.f32.mxu0 0.0
    %315 = vmatmul.mubr.f32.gmra.mrb[0].mxu0 %v123
    %v316 = vpop.f32.mrb[0].mxu0
    %v317 = vadd.f32 0.0, %v316
    %v318 = vpop.f32.mrb[0].mxu0
    %319 = vmatprep.mubr.f32.mxu0 0.0
    %320 = vmatmul.mubr.f32.gmra.mrb[0].mxu0 %v126
    %v321 = vpop.f32.mrb[0].mxu0
    %v322 = vadd.f32 0.0, %v321
    %v323 = vpop.f32.mrb[0].mxu0
    %324 = vmatprep.mubr.f32.mxu0 0.0
    %325 = vmatmul.mubr.f32.gmra.mrb[0].mxu0 %v129
    %v326 = vpop.f32.mrb[0].mxu0
    %v327 = vadd.f32 0.0, %v326
    %v328 = vpop.f32.mrb[0].mxu0
    %329 = vmatprep.mubr.f32.mxu0 0.0
    %330 = vmatmul.mubr.f32.gmra.mrb[0].mxu0 %v132
    %v331 = vpop.f32.mrb[0].mxu0
    %v332 = vadd.f32 0.0, %v331
    %v333 = vpop.f32.mrb[0].mxu0
    %334 = vmatprep.mubr.f32.mxu0 0.0
    %335 = vmatmul.mubr.f32.gmra.mrb[0].mxu0 %v135
    %v336 = vpop.f32.mrb[0].mxu0
    %v337 = vadd.f32 0.0, %v336
    %v338 = vpop.f32.mrb[0].mxu0
    %339 = vmatprep.mubr.f32.mxu0 0.0
    %340 = vmatmul.mubr.f32.gmra.mrb[0].mxu0 %v138
    %v341 = vpop.f32.mrb[0].mxu0
    %v342 = vadd.f32 0.0, %v341
    %v343 = vpop.f32.mrb[0].mxu0
    %344 = vmatprep.mubr.f32.mxu0 0.0
    %345 = vmatmul.mubr.f32.gmra.mrb[0].mxu0 %v141
    %v346 = vpop.f32.mrb[0].mxu0
    %v347 = vadd.f32 0.0, %v346
    %v348 = vpop.f32.mrb[0].mxu0
    %349 = vmatprep.mubr.f32.mxu0 0.0
    %350 = vmatmul.mubr.f32.gmra.mrb[0].mxu0 %v144
    %v351 = vpop.f32.mrb[0].mxu0
    %v352 = vadd.f32 0.0, %v351
    %v353 = vpop.f32.mrb[0].mxu0
    %354 = vmatprep.mubr.f32.mxu0 0.0
    %355 = vmatmul.mubr.f32.gmra.mrb[0].mxu0 %v147
    %v356 = vpop.f32.mrb[0].mxu0
    %v357 = vadd.f32 0.0, %v356
    %v358 = vpop.f32.mrb[0].mxu0
    %359 = vmatprep.mubr.f32.mxu0 0.0
    %360 = vmatmul.mubr.f32.gmra.mrb[0].mxu0 %v150
    %v361 = vpop.f32.mrb[0].mxu0
    %v362 = vadd.f32 0.0, %v361
    %v363 = vpop.f32.mrb[0].mxu0
    %364 = vmatprep.mubr.f32.mxu0 0.0
    %365 = vmatmul.mubr.f32.gmra.mrb[0].mxu0 %v153
    %v366 = vpop.f32.mrb[0].mxu0
    %v367 = vadd.f32 0.0, %v366
    %v368 = vpop.f32.mrb[0].mxu0
    %369 = vmatprep.mubr.f32.mxu0 0.0
    %370 = vmatmul.mubr.f32.gmra.mrb[0].mxu0 %v156
    %v371 = vpop.f32.mrb[0].mxu0
    %v372 = vadd.f32 0.0, %v371
    %v373 = vpop.f32.mrb[0].mxu0
    %374 = vmatprep.mubr.f32.mxu0 0.0
    %375 = vmatmul.mubr.f32.gmra.mrb[0].mxu0 %v159
    %v376 = vpop.f32.mrb[0].mxu0
    %v377 = vadd.f32 0.0, %v376
    %v378 = vpop.f32.mrb[0].mxu0
    %379 = vmatprep.mubr.f32.mxu0 0.0
    %380 = vmatmul.mubr.f32.gmra.mrb[0].mxu0 %v162
    %v381 = vpop.f32.mrb[0].mxu0
    %v382 = vadd.f32 0.0, %v381
    %v383 = vpop.f32.mrb[0].mxu0
    %384 = vmatprep.mubr.f32.mxu0 0.0
    %385 = vmatmul.mubr.f32.gmra.mrb[0].mxu0 %v165
    %v386 = vpop.f32.mrb[0].mxu0
    %v387 = vadd.f32 0.0, %v386
    %v388 = vpop.f32.mrb[0].mxu0
    %389 = vmatprep.mubr.f32.mxu0 0.0
    %390 = vmatmul.mubr.f32.gmra.mrb[0].mxu0 %v168
    %v391 = vpop.f32.mrb[0].mxu0
    %v392 = vadd.f32 0.0, %v391
    %v393 = vpop.f32.mrb[0].mxu0
    %394 = vdwg.mxu0
    %v395 = vmax.f32 %v237, 0.0
    %v396 = vmax.f32 %v242, 0.0
    %v397 = vmax.f32 %v247, 0.0
    %v398 = vmax.f32 %v252, 0.0
    %v399 = vmax.f32 %v257, 0.0
    %v400 = vmax.f32 %v262, 0.0
    %v401 = vmax.f32 %v267, 0.0
    %v402 = vmax.f32 %v272, 0.0
    %v403 = vmax.f32 %v277, 0.0
    %v404 = vmax.f32 %v282, 0.0
    %v405 = vmax.f32 %v287, 0.0
    %v406 = vmax.f32 %v292, 0.0
    %v407 = vmax.f32 %v297, 0.0
    %v408 = vmax.f32 %v302, 0.0
    %v409 = vmax.f32 %v307, 0.0
    %v410 = vmax.f32 %v312, 0.0
    %v411 = vmax.f32 %v317, 0.0
    %v412 = vmax.f32 %v322, 0.0
    %v413 = vmax.f32 %v327, 0.0
    %v414 = vmax.f32 %v332, 0.0
    %v415 = vmax.f32 %v337, 0.0
    %v416 = vmax.f32 %v342, 0.0
    %v417 = vmax.f32 %v347, 0.0
    %v418 = vmax.f32 %v352, 0.0
    %v419 = vmax.f32 %v357, 0.0
    %v420 = vmax.f32 %v362, 0.0
    %v421 = vmax.f32 %v367, 0.0
    %v422 = vmax.f32 %v372, 0.0
    %v423 = vmax.f32 %v377, 0.0
    %v424 = vmax.f32 %v382, 0.0
    %v425 = vmax.f32 %v387, 0.0
    %v426 = vmax.f32 %v392, 0.0
    %v427 = vld [vmem:[%s3] sm:$0xff]
    %v428 = vld [vmem:[%s3 + $0x8] sm:$0xff]
    %v429 = vld [vmem:[%s3 + $0x10] sm:$0xff]
    %v430 = vld [vmem:[%s3 + $0x18] sm:$0xff]
    %vm431 = vcmask 261120
    %v433 = vsel %vm431, %v395, 0
    %v436 = vsel %vm431, %v396, 0
    %v439 = vsel %vm431, %v397, 0
    %v442 = vsel %vm431, %v398, 0
    %v445 = vsel %vm431, %v399, 0
    %v448 = vsel %vm431, %v400, 0
    %v451 = vsel %vm431, %v401, 0
    %v454 = vsel %vm431, %v402, 0
    %v457 = vsel %vm431, %v403, 0
    %v460 = vsel %vm431, %v404, 0
    %v463 = vsel %vm431, %v405, 0
    %v466 = vsel %vm431, %v406, 0
    %v469 = vsel %vm431, %v407, 0
    %v472 = vsel %vm431, %v408, 0
    %v475 = vsel %vm431, %v409, 0
    %v478 = vsel %vm431, %v410, 0
    %v481 = vsel %vm431, %v411, 0
    %v484 = vsel %vm431, %v412, 0
    %v487 = vsel %vm431, %v413, 0
    %v490 = vsel %vm431, %v414, 0
    %v493 = vsel %vm431, %v415, 0
    %v496 = vsel %vm431, %v416, 0
    %v499 = vsel %vm431, %v417, 0
    %v502 = vsel %vm431, %v418, 0
    %v505 = vsel %vm431, %v419, 0
    %v508 = vsel %vm431, %v420, 0
    %v511 = vsel %vm431, %v421, 0
    %v514 = vsel %vm431, %v422, 0
    %v517 = vsel %vm431, %v423, 0
    %v520 = vsel %vm431, %v424, 0
    %v523 = vsel %vm431, %v425, 0
    %v526 = vsel %vm431, %v426, 0
    %528 = vmatprep.subr.mxu0 0.0
    %529 = vmatpush1.msra.mxu0 %v427
    %530 = vmatprep.subr.mxu0 0.0
    %531 = vmatpush1.msra.mxu0 %v428
    %532 = vmatprep.subr.mxu0 0.0
    %533 = vmatpush1.msra.mxu0 %v429
    %534 = vmatprep.subr.mxu0 0.0
    %535 = vmatpush1.msra.mxu0 %v430
    %536 = vmatprep.subr.mxu0 0.0
    %537 = vmatpush1.msra.mxu0 0.0
    %538 = vmatprep.subr.mxu0 0.0
    %539 = vmatpush1.msra.mxu0 0.0
    %540 = vmatprep.subr.mxu0 0.0
    %541 = vmatpush1.msra.mxu0 0.0
    %542 = vmatprep.subr.mxu0 0.0
    %543 = vmatpush1.msra.mxu0 0.0
    %544 = vmatprep.subr.mxu0 0.0
    %545 = vmatpush1.msra.mxu0 0.0
    %546 = vmatprep.subr.mxu0 0.0
    %547 = vmatpush1.msra.mxu0 0.0
    %548 = vmatprep.subr.mxu0 0.0
    %549 = vmatpush1.msra.mxu0 0.0
    %550 = vmatprep.subr.mxu0 0.0
    %551 = vmatpush1.msra.mxu0 0.0
    %552 = vmatprep.subr.mxu0 0.0
    %553 = vmatpush1.msra.mxu0 0.0
    %554 = vmatprep.subr.mxu0 0.0
    %555 = vmatpush1.msra.mxu0 0.0
    %556 = vmatprep.subr.mxu0 0.0
    %557 = vmatpush1.msra.mxu0 0.0
    %558 = vmatprep.subr.mxu0 0.0
    %559 = vmatpush1.msra.mxu0 0.0
    %560 = vmatprep.subr.mxu0 0.0
    %561 = vmatpush1.msra.mxu0 0.0
    %562 = vmatprep.subr.mxu0 0.0
    %563 = vmatpush1.msra.mxu0 0.0
    %564 = vmatprep.subr.mxu0 0.0
    %565 = vmatpush1.msra.mxu0 0.0
    %566 = vmatprep.subr.mxu0 0.0
    %567 = vmatpush1.msra.mxu0 0.0
    %568 = vmatprep.subr.mxu0 0.0
    %569 = vmatpush1.msra.mxu0 0.0
    %570 = vmatprep.subr.mxu0 0.0
    %571 = vmatpush1.msra.mxu0 0.0
    %572 = vmatprep.subr.mxu0 0.0
    %573 = vmatpush1.msra.mxu0 0.0
    %574 = vmatprep.subr.mxu0 0.0
    %575 = vmatpush1.msra.mxu0 0.0
    %576 = vmatprep.subr.mxu0 0.0
    %577 = vmatpush1.msra.mxu0 0.0
    %578 = vmatprep.subr.mxu0 0.0
    %579 = vmatpush1.msra.mxu0 0.0
    %580 = vmatprep.subr.mxu0 0.0
    %581 = vmatpush1.msra.mxu0 0.0
    %582 = vmatprep.subr.mxu0 0.0
    %583 = vmatpush1.msra.mxu0 0.0
    %584 = vmatprep.subr.mxu0 0.0
    %585 = vmatpush1.msra.mxu0 0.0
    %586 = vmatprep.subr.mxu0 0.0
    %587 = vmatpush1.msra.mxu0 0.0
    %588 = vmatprep.subr.mxu0 0.0
    %589 = vmatpush1.msra.mxu0 0.0
    %590 = vmatprep.subr.mxu0 0.0
    %591 = vmatpush1.msra.mxu0 0.0
    %592 = vmatprep.mubr.f32.mxu0 0.0
    %593 = vmatmul.mubr.f32.gmra.mrb[0].mxu0 %v433
    %v594 = vpop.f32.mrb[0].mxu0
    %v595 = vadd.f32 0.0, %v594
    %v596 = vpop.f32.mrb[0].mxu0
    %597 = vmatprep.mubr.f32.mxu0 0.0
    %598 = vmatmul.mubr.f32.gmra.mrb[0].mxu0 %v436
    %v599 = vpop.f32.mrb[0].mxu0
    %v600 = vadd.f32 0.0, %v599
    %v601 = vpop.f32.mrb[0].mxu0
    %602 = vmatprep.mubr.f32.mxu0 0.0
    %603 = vmatmul.mubr.f32.gmra.mrb[0].mxu0 %v439
    %v604 = vpop.f32.mrb[0].mxu0
    %v605 = vadd.f32 0.0, %v604
    %v606 = vpop.f32.mrb[0].mxu0
    %607 = vmatprep.mubr.f32.mxu0 0.0
    %608 = vmatmul.mubr.f32.gmra.mrb[0].mxu0 %v442
    %v609 = vpop.f32.mrb[0].mxu0
    %v610 = vadd.f32 0.0, %v609
    %v611 = vpop.f32.mrb[0].mxu0
    %612 = vmatprep.mubr.f32.mxu0 0.0
    %613 = vmatmul.mubr.f32.gmra.mrb[0].mxu0 %v445
    %v614 = vpop.f32.mrb[0].mxu0
    %v615 = vadd.f32 0.0, %v614
    %v616 = vpop.f32.mrb[0].mxu0
    %617 = vmatprep.mubr.f32.mxu0 0.0
    %618 = vmatmul.mubr.f32.gmra.mrb[0].mxu0 %v448
    %v619 = vpop.f32.mrb[0].mxu0
    %v620 = vadd.f32 0.0, %v619
    %v621 = vpop.f32.mrb[0].mxu0
    %622 = vmatprep.mubr.f32.mxu0 0.0
    %623 = vmatmul.mubr.f32.gmra.mrb[0].mxu0 %v451
    %v624 = vpop.f32.mrb[0].mxu0
    %v625 = vadd.f32 0.0, %v624
    %v626 = vpop.f32.mrb[0].mxu0
    %627 = vmatprep.mubr.f32.mxu0 0.0
    %628 = vmatmul.mubr.f32.gmra.mrb[0].mxu0 %v454
    %v629 = vpop.f32.mrb[0].mxu0
    %v630 = vadd.f32 0.0, %v629
    %v631 = vpop.f32.mrb[0].mxu0
    %632 = vmatprep.mubr.f32.mxu0 0.0
    %633 = vmatmul.mubr.f32.gmra.mrb[0].mxu0 %v457
    %v634 = vpop.f32.mrb[0].mxu0
    %v635 = vadd.f32 0.0, %v634
    %v636 = vpop.f32.mrb[0].mxu0
    %637 = vmatprep.mubr.f32.mxu0 0.0
    %638 = vmatmul.mubr.f32.gmra.mrb[0].mxu0 %v460
    %v639 = vpop.f32.mrb[0].mxu0
    %v640 = vadd.f32 0.0, %v639
    %v641 = vpop.f32.mrb[0].mxu0
    %642 = vmatprep.mubr.f32.mxu0 0.0
    %643 = vmatmul.mubr.f32.gmra.mrb[0].mxu0 %v463
    %v644 = vpop.f32.mrb[0].mxu0
    %v645 = vadd.f32 0.0, %v644
    %v646 = vpop.f32.mrb[0].mxu0
    %647 = vmatprep.mubr.f32.mxu0 0.0
    %648 = vmatmul.mubr.f32.gmra.mrb[0].mxu0 %v466
    %v649 = vpop.f32.mrb[0].mxu0
    %v650 = vadd.f32 0.0, %v649
    %v651 = vpop.f32.mrb[0].mxu0
    %652 = vmatprep.mubr.f32.mxu0 0.0
    %653 = vmatmul.mubr.f32.gmra.mrb[0].mxu0 %v469
    %v654 = vpop.f32.mrb[0].mxu0
    %v655 = vadd.f32 0.0, %v654
    %v656 = vpop.f32.mrb[0].mxu0
    %657 = vmatprep.mubr.f32.mxu0 0.0
    %658 = vmatmul.mubr.f32.gmra.mrb[0].mxu0 %v472
    %v659 = vpop.f32.mrb[0].mxu0
    %v660 = vadd.f32 0.0, %v659
    %v661 = vpop.f32.mrb[0].mxu0
    %662 = vmatprep.mubr.f32.mxu0 0.0
    %663 = vmatmul.mubr.f32.gmra.mrb[0].mxu0 %v475
    %v664 = vpop.f32.mrb[0].mxu0
    %v665 = vadd.f32 0.0, %v664
    %v666 = vpop.f32.mrb[0].mxu0
    %667 = vmatprep.mubr.f32.mxu0 0.0
    %668 = vmatmul.mubr.f32.gmra.mrb[0].mxu0 %v478
    %v669 = vpop.f32.mrb[0].mxu0
    %v670 = vadd.f32 0.0, %v669
    %v671 = vpop.f32.mrb[0].mxu0
    %672 = vmatprep.mubr.f32.mxu0 0.0
    %673 = vmatmul.mubr.f32.gmra.mrb[0].mxu0 %v481
    %v674 = vpop.f32.mrb[0].mxu0
    %v675 = vadd.f32 0.0, %v674
    %v676 = vpop.f32.mrb[0].mxu0
    %677 = vmatprep.mubr.f32.mxu0 0.0
    %678 = vmatmul.mubr.f32.gmra.mrb[0].mxu0 %v484
    %v679 = vpop.f32.mrb[0].mxu0
    %v680 = vadd.f32 0.0, %v679
    %v681 = vpop.f32.mrb[0].mxu0
    %682 = vmatprep.mubr.f32.mxu0 0.0
    %683 = vmatmul.mubr.f32.gmra.mrb[0].mxu0 %v487
    %v684 = vpop.f32.mrb[0].mxu0
    %v685 = vadd.f32 0.0, %v684
    %v686 = vpop.f32.mrb[0].mxu0
    %687 = vmatprep.mubr.f32.mxu0 0.0
    %688 = vmatmul.mubr.f32.gmra.mrb[0].mxu0 %v490
    %v689 = vpop.f32.mrb[0].mxu0
    %v690 = vadd.f32 0.0, %v689
    %v691 = vpop.f32.mrb[0].mxu0
    %692 = vmatprep.mubr.f32.mxu0 0.0
    %693 = vmatmul.mubr.f32.gmra.mrb[0].mxu0 %v493
    %v694 = vpop.f32.mrb[0].mxu0
    %v695 = vadd.f32 0.0, %v694
    %v696 = vpop.f32.mrb[0].mxu0
    %697 = vmatprep.mubr.f32.mxu0 0.0
    %698 = vmatmul.mubr.f32.gmra.mrb[0].mxu0 %v496
    %v699 = vpop.f32.mrb[0].mxu0
    %v700 = vadd.f32 0.0, %v699
    %v701 = vpop.f32.mrb[0].mxu0
    %702 = vmatprep.mubr.f32.mxu0 0.0
    %703 = vmatmul.mubr.f32.gmra.mrb[0].mxu0 %v499
    %v704 = vpop.f32.mrb[0].mxu0
    %v705 = vadd.f32 0.0, %v704
    %v706 = vpop.f32.mrb[0].mxu0
    %707 = vmatprep.mubr.f32.mxu0 0.0
    %708 = vmatmul.mubr.f32.gmra.mrb[0].mxu0 %v502
    %v709 = vpop.f32.mrb[0].mxu0
    %v710 = vadd.f32 0.0, %v709
    %v711 = vpop.f32.mrb[0].mxu0
    %712 = vmatprep.mubr.f32.mxu0 0.0
    %713 = vmatmul.mubr.f32.gmra.mrb[0].mxu0 %v505
    %v714 = vpop.f32.mrb[0].mxu0
    %v715 = vadd.f32 0.0, %v714
    %v716 = vpop.f32.mrb[0].mxu0
    %717 = vmatprep.mubr.f32.mxu0 0.0
    %718 = vmatmul.mubr.f32.gmra.mrb[0].mxu0 %v508
    %v719 = vpop.f32.mrb[0].mxu0
    %v720 = vadd.f32 0.0, %v719
    %v721 = vpop.f32.mrb[0].mxu0
    %722 = vmatprep.mubr.f32.mxu0 0.0
    %723 = vmatmul.mubr.f32.gmra.mrb[0].mxu0 %v511
    %v724 = vpop.f32.mrb[0].mxu0
    %v725 = vadd.f32 0.0, %v724
    %v726 = vpop.f32.mrb[0].mxu0
    %727 = vmatprep.mubr.f32.mxu0 0.0
    %728 = vmatmul.mubr.f32.gmra.mrb[0].mxu0 %v514
    %v729 = vpop.f32.mrb[0].mxu0
    %v730 = vadd.f32 0.0, %v729
    %v731 = vpop.f32.mrb[0].mxu0
    %732 = vmatprep.mubr.f32.mxu0 0.0
    %733 = vmatmul.mubr.f32.gmra.mrb[0].mxu0 %v517
    %v734 = vpop.f32.mrb[0].mxu0
    %v735 = vadd.f32 0.0, %v734
    %v736 = vpop.f32.mrb[0].mxu0
    %737 = vmatprep.mubr.f32.mxu0 0.0
    %738 = vmatmul.mubr.f32.gmra.mrb[0].mxu0 %v520
    %v739 = vpop.f32.mrb[0].mxu0
    %v740 = vadd.f32 0.0, %v739
    %v741 = vpop.f32.mrb[0].mxu0
    %742 = vmatprep.mubr.f32.mxu0 0.0
    %743 = vmatmul.mubr.f32.gmra.mrb[0].mxu0 %v523
    %v744 = vpop.f32.mrb[0].mxu0
    %v745 = vadd.f32 0.0, %v744
    %v746 = vpop.f32.mrb[0].mxu0
    %747 = vmatprep.mubr.f32.mxu0 0.0
    %748 = vmatmul.mubr.f32.gmra.mrb[0].mxu0 %v526
    %v749 = vpop.f32.mrb[0].mxu0
    %v750 = vadd.f32 0.0, %v749
    %v751 = vpop.f32.mrb[0].mxu0
    %752 = vdwg.mxu0
    %v753 = vmax.f32 %v595, 0.0
    %v754 = vmax.f32 %v600, 0.0
    %v755 = vmax.f32 %v605, 0.0
    %v756 = vmax.f32 %v610, 0.0
    %v757 = vmax.f32 %v615, 0.0
    %v758 = vmax.f32 %v620, 0.0
    %v759 = vmax.f32 %v625, 0.0
    %v760 = vmax.f32 %v630, 0.0
    %v761 = vmax.f32 %v635, 0.0
    %v762 = vmax.f32 %v640, 0.0
    %v763 = vmax.f32 %v645, 0.0
    %v764 = vmax.f32 %v650, 0.0
    %v765 = vmax.f32 %v655, 0.0
    %v766 = vmax.f32 %v660, 0.0
    %v767 = vmax.f32 %v665, 0.0
    %v768 = vmax.f32 %v670, 0.0
    %v769 = vmax.f32 %v675, 0.0
    %v770 = vmax.f32 %v680, 0.0
    %v771 = vmax.f32 %v685, 0.0
    %v772 = vmax.f32 %v690, 0.0
    %v773 = vmax.f32 %v695, 0.0
    %v774 = vmax.f32 %v700, 0.0
    %v775 = vmax.f32 %v705, 0.0
    %v776 = vmax.f32 %v710, 0.0
    %v777 = vmax.f32 %v715, 0.0
    %v778 = vmax.f32 %v720, 0.0
    %v779 = vmax.f32 %v725, 0.0
    %v780 = vmax.f32 %v730, 0.0
    %v781 = vmax.f32 %v735, 0.0
    %v782 = vmax.f32 %v740, 0.0
    %v783 = vmax.f32 %v745, 0.0
    %v784 = vmax.f32 %v750, 0.0
    %v785 = vld [vmem:[%s4] sm:$0x1]
    %v787 = vlaneseq
    %v788 = vshrl.u32 %v787, 7
    %v789 = vsub.s32 0, %v788
    %v790 = vrot.slane %v785, %v789
    %v792 = vmul.f32 %v753, %v790
    %v793 = vmul.f32 %v754, %v790
    %v794 = vmul.f32 %v755, %v790
    %v795 = vmul.f32 %v756, %v790
    %v796 = vmul.f32 %v757, %v790
    %v797 = vmul.f32 %v758, %v790
    %v798 = vmul.f32 %v759, %v790
    %v799 = vmul.f32 %v760, %v790
    %v800 = vmul.f32 %v761, %v790
    %v801 = vmul.f32 %v762, %v790
    %v802 = vmul.f32 %v763, %v790
    %v803 = vmul.f32 %v764, %v790
    %v804 = vmul.f32 %v765, %v790
    %v805 = vmul.f32 %v766, %v790
    %v806 = vmul.f32 %v767, %v790
    %v807 = vmul.f32 %v768, %v790
    %v808 = vmul.f32 %v769, %v790
    %v809 = vmul.f32 %v770, %v790
    %v810 = vmul.f32 %v771, %v790
    %v811 = vmul.f32 %v772, %v790
    %v812 = vmul.f32 %v773, %v790
    %v813 = vmul.f32 %v774, %v790
    %v814 = vmul.f32 %v775, %v790
    %v815 = vmul.f32 %v776, %v790
    %v816 = vmul.f32 %v777, %v790
    %v817 = vmul.f32 %v778, %v790
    %v818 = vmul.f32 %v779, %v790
    %v819 = vmul.f32 %v780, %v790
    %v820 = vmul.f32 %v781, %v790
    %v821 = vmul.f32 %v782, %v790
    %v822 = vmul.f32 %v783, %v790
    %v823 = vmul.f32 %v784, %v790
    %v824 = vsel %vm431, %v792, 0.0
    %825 = vadd.xlane.f32.xlu0 %v824
    %v826 = vpop.xlane.xlu0 %825
    %v827 = vsel %vm431, %v793, 0.0
    %828 = vadd.xlane.f32.xlu0 %v827
    %v829 = vpop.xlane.xlu0 %828
    %v830 = vsel %vm431, %v794, 0.0
    %831 = vadd.xlane.f32.xlu0 %v830
    %v832 = vpop.xlane.xlu0 %831
    %v833 = vsel %vm431, %v795, 0.0
    %834 = vadd.xlane.f32.xlu0 %v833
    %v835 = vpop.xlane.xlu0 %834
    %v836 = vsel %vm431, %v796, 0.0
    %837 = vadd.xlane.f32.xlu0 %v836
    %v838 = vpop.xlane.xlu0 %837
    %v839 = vsel %vm431, %v797, 0.0
    %840 = vadd.xlane.f32.xlu0 %v839
    %v841 = vpop.xlane.xlu0 %840
    %v842 = vsel %vm431, %v798, 0.0
    %843 = vadd.xlane.f32.xlu0 %v842
    %v844 = vpop.xlane.xlu0 %843
    %v845 = vsel %vm431, %v799, 0.0
    %846 = vadd.xlane.f32.xlu0 %v845
    %v847 = vpop.xlane.xlu0 %846
    %v848 = vsel %vm431, %v800, 0.0
    %849 = vadd.xlane.f32.xlu0 %v848
    %v850 = vpop.xlane.xlu0 %849
    %v851 = vsel %vm431, %v801, 0.0
    %852 = vadd.xlane.f32.xlu0 %v851
    %v853 = vpop.xlane.xlu0 %852
    %v854 = vsel %vm431, %v802, 0.0
    %855 = vadd.xlane.f32.xlu0 %v854
    %v856 = vpop.xlane.xlu0 %855
    %v857 = vsel %vm431, %v803, 0.0
    %858 = vadd.xlane.f32.xlu0 %v857
    %v859 = vpop.xlane.xlu0 %858
    %v860 = vsel %vm431, %v804, 0.0
    %861 = vadd.xlane.f32.xlu0 %v860
    %v862 = vpop.xlane.xlu0 %861
    %v863 = vsel %vm431, %v805, 0.0
    %864 = vadd.xlane.f32.xlu0 %v863
    %v865 = vpop.xlane.xlu0 %864
    %v866 = vsel %vm431, %v806, 0.0
    %867 = vadd.xlane.f32.xlu0 %v866
    %v868 = vpop.xlane.xlu0 %867
    %v869 = vsel %vm431, %v807, 0.0
    %870 = vadd.xlane.f32.xlu0 %v869
    %v871 = vpop.xlane.xlu0 %870
    %v872 = vsel %vm431, %v808, 0.0
    %873 = vadd.xlane.f32.xlu0 %v872
    %v874 = vpop.xlane.xlu0 %873
    %v875 = vsel %vm431, %v809, 0.0
    %876 = vadd.xlane.f32.xlu0 %v875
    %v877 = vpop.xlane.xlu0 %876
    %v878 = vsel %vm431, %v810, 0.0
    %879 = vadd.xlane.f32.xlu0 %v878
    %v880 = vpop.xlane.xlu0 %879
    %v881 = vsel %vm431, %v811, 0.0
    %882 = vadd.xlane.f32.xlu0 %v881
    %v883 = vpop.xlane.xlu0 %882
    %v884 = vsel %vm431, %v812, 0.0
    %885 = vadd.xlane.f32.xlu0 %v884
    %v886 = vpop.xlane.xlu0 %885
    %v887 = vsel %vm431, %v813, 0.0
    %888 = vadd.xlane.f32.xlu0 %v887
    %v889 = vpop.xlane.xlu0 %888
    %v890 = vsel %vm431, %v814, 0.0
    %891 = vadd.xlane.f32.xlu0 %v890
    %v892 = vpop.xlane.xlu0 %891
    %v893 = vsel %vm431, %v815, 0.0
    %894 = vadd.xlane.f32.xlu0 %v893
    %v895 = vpop.xlane.xlu0 %894
    %v896 = vsel %vm431, %v816, 0.0
    %897 = vadd.xlane.f32.xlu0 %v896
    %v898 = vpop.xlane.xlu0 %897
    %v899 = vsel %vm431, %v817, 0.0
    %900 = vadd.xlane.f32.xlu0 %v899
    %v901 = vpop.xlane.xlu0 %900
    %v902 = vsel %vm431, %v818, 0.0
    %903 = vadd.xlane.f32.xlu0 %v902
    %v904 = vpop.xlane.xlu0 %903
    %v905 = vsel %vm431, %v819, 0.0
    %906 = vadd.xlane.f32.xlu0 %v905
    %v907 = vpop.xlane.xlu0 %906
    %v908 = vsel %vm431, %v820, 0.0
    %909 = vadd.xlane.f32.xlu0 %v908
    %v910 = vpop.xlane.xlu0 %909
    %v911 = vsel %vm431, %v821, 0.0
    %912 = vadd.xlane.f32.xlu0 %v911
    %v913 = vpop.xlane.xlu0 %912
    %v914 = vsel %vm431, %v822, 0.0
    %915 = vadd.xlane.f32.xlu0 %v914
    %v916 = vpop.xlane.xlu0 %915
    %v917 = vsel %vm431, %v823, 0.0
    %918 = vadd.xlane.f32.xlu0 %v917
    %v919 = vpop.xlane.xlu0 %918
    %v920 = vxor.u32 %v826, 2147483648
    %v921 = vxor.u32 %v829, 2147483648
    %v922 = vxor.u32 %v832, 2147483648
    %v923 = vxor.u32 %v835, 2147483648
    %v924 = vxor.u32 %v838, 2147483648
    %v925 = vxor.u32 %v841, 2147483648
    %v926 = vxor.u32 %v844, 2147483648
    %v927 = vxor.u32 %v847, 2147483648
    %v928 = vxor.u32 %v850, 2147483648
    %v929 = vxor.u32 %v853, 2147483648
    %v930 = vxor.u32 %v856, 2147483648
    %v931 = vxor.u32 %v859, 2147483648
    %v932 = vxor.u32 %v862, 2147483648
    %v933 = vxor.u32 %v865, 2147483648
    %v934 = vxor.u32 %v868, 2147483648
    %v935 = vxor.u32 %v871, 2147483648
    %v936 = vxor.u32 %v874, 2147483648
    %v937 = vxor.u32 %v877, 2147483648
    %v938 = vxor.u32 %v880, 2147483648
    %v939 = vxor.u32 %v883, 2147483648
    %v940 = vxor.u32 %v886, 2147483648
    %v941 = vxor.u32 %v889, 2147483648
    %v942 = vxor.u32 %v892, 2147483648
    %v943 = vxor.u32 %v895, 2147483648
    %v944 = vxor.u32 %v898, 2147483648
    %v945 = vxor.u32 %v901, 2147483648
    %v946 = vxor.u32 %v904, 2147483648
    %v947 = vxor.u32 %v907, 2147483648
    %v948 = vxor.u32 %v910, 2147483648
    %v949 = vxor.u32 %v913, 2147483648
    %v950 = vxor.u32 %v916, 2147483648
    %v951 = vxor.u32 %v919, 2147483648
    %v952 = vmul.f32 %v920, 1.442695
    %v953 = vpow.pop %v952
    %v954 = vmul.f32 %v921, 1.442695
    %v955 = vpow.pop %v954
    %v956 = vmul.f32 %v922, 1.442695
    %v957 = vpow.pop %v956
    %v958 = vmul.f32 %v923, 1.442695
    %v959 = vpow.pop %v958
    %v960 = vmul.f32 %v924, 1.442695
    %v961 = vpow.pop %v960
    %v962 = vmul.f32 %v925, 1.442695
    %v963 = vpow.pop %v962
    %v964 = vmul.f32 %v926, 1.442695
    %v965 = vpow.pop %v964
    %v966 = vmul.f32 %v927, 1.442695
    %v967 = vpow.pop %v966
    %v968 = vmul.f32 %v928, 1.442695
    %v969 = vpow.pop %v968
    %v970 = vmul.f32 %v929, 1.442695
    %v971 = vpow.pop %v970
    %v972 = vmul.f32 %v930, 1.442695
    %v973 = vpow.pop %v972
    %v974 = vmul.f32 %v931, 1.442695
    %v975 = vpow.pop %v974
    %v976 = vmul.f32 %v932, 1.442695
    %v977 = vpow.pop %v976
    %v978 = vmul.f32 %v933, 1.442695
    %v979 = vpow.pop %v978
    %v980 = vmul.f32 %v934, 1.442695
    %v981 = vpow.pop %v980
    %v982 = vmul.f32 %v935, 1.442695
    %v983 = vpow.pop %v982
    %v984 = vmul.f32 %v936, 1.442695
    %v985 = vpow.pop %v984
    %v986 = vmul.f32 %v937, 1.442695
    %v987 = vpow.pop %v986
    %v988 = vmul.f32 %v938, 1.442695
    %v989 = vpow.pop %v988
    %v990 = vmul.f32 %v939, 1.442695
    %v991 = vpow.pop %v990
    %v992 = vmul.f32 %v940, 1.442695
    %v993 = vpow.pop %v992
    %v994 = vmul.f32 %v941, 1.442695
    %v995 = vpow.pop %v994
    %v996 = vmul.f32 %v942, 1.442695
    %v997 = vpow.pop %v996
    %v998 = vmul.f32 %v943, 1.442695
    %v999 = vpow.pop %v998
    %v1000 = vmul.f32 %v944, 1.442695
    %v1001 = vpow.pop %v1000
    %v1002 = vmul.f32 %v945, 1.442695
    %v1003 = vpow.pop %v1002
    %v1004 = vmul.f32 %v946, 1.442695
    %v1005 = vpow.pop %v1004
    %v1006 = vmul.f32 %v947, 1.442695
    %v1007 = vpow.pop %v1006
    %v1008 = vmul.f32 %v948, 1.442695
    %v1009 = vpow.pop %v1008
    %v1010 = vmul.f32 %v949, 1.442695
    %v1011 = vpow.pop %v1010
    %v1012 = vmul.f32 %v950, 1.442695
    %v1013 = vpow.pop %v1012
    %v1014 = vmul.f32 %v951, 1.442695
    %v1015 = vpow.pop %v1014
    %v1016 = vadd.f32 %v953, 1.0
    %v1017 = vadd.f32 %v955, 1.0
    %v1018 = vadd.f32 %v957, 1.0
    %v1019 = vadd.f32 %v959, 1.0
    %v1020 = vadd.f32 %v961, 1.0
    %v1021 = vadd.f32 %v963, 1.0
    %v1022 = vadd.f32 %v965, 1.0
    %v1023 = vadd.f32 %v967, 1.0
    %v1024 = vadd.f32 %v969, 1.0
    %v1025 = vadd.f32 %v971, 1.0
    %v1026 = vadd.f32 %v973, 1.0
    %v1027 = vadd.f32 %v975, 1.0
    %v1028 = vadd.f32 %v977, 1.0
    %v1029 = vadd.f32 %v979, 1.0
    %v1030 = vadd.f32 %v981, 1.0
    %v1031 = vadd.f32 %v983, 1.0
    %v1032 = vadd.f32 %v985, 1.0
    %v1033 = vadd.f32 %v987, 1.0
    %v1034 = vadd.f32 %v989, 1.0
    %v1035 = vadd.f32 %v991, 1.0
    %v1036 = vadd.f32 %v993, 1.0
    %v1037 = vadd.f32 %v995, 1.0
    %v1038 = vadd.f32 %v997, 1.0
    %v1039 = vadd.f32 %v999, 1.0
    %v1040 = vadd.f32 %v1001, 1.0
    %v1041 = vadd.f32 %v1003, 1.0
    %v1042 = vadd.f32 %v1005, 1.0
    %v1043 = vadd.f32 %v1007, 1.0
    %v1044 = vadd.f32 %v1009, 1.0
    %v1045 = vadd.f32 %v1011, 1.0
    %v1046 = vadd.f32 %v1013, 1.0
    %v1047 = vadd.f32 %v1015, 1.0
    %v1048 = vrcp.pop %v1016
    %v1049 = vmul.f32 1.0, %v1048
    %v1050 = vrcp.pop %v1017
    %v1051 = vmul.f32 1.0, %v1050
    %v1052 = vrcp.pop %v1018
    %v1053 = vmul.f32 1.0, %v1052
    %v1054 = vrcp.pop %v1019
    %v1055 = vmul.f32 1.0, %v1054
    %v1056 = vrcp.pop %v1020
    %v1057 = vmul.f32 1.0, %v1056
    %v1058 = vrcp.pop %v1021
    %v1059 = vmul.f32 1.0, %v1058
    %v1060 = vrcp.pop %v1022
    %v1061 = vmul.f32 1.0, %v1060
    %v1062 = vrcp.pop %v1023
    %v1063 = vmul.f32 1.0, %v1062
    %v1064 = vrcp.pop %v1024
    %v1065 = vmul.f32 1.0, %v1064
    %v1066 = vrcp.pop %v1025
    %v1067 = vmul.f32 1.0, %v1066
    %v1068 = vrcp.pop %v1026
    %v1069 = vmul.f32 1.0, %v1068
    %v1070 = vrcp.pop %v1027
    %v1071 = vmul.f32 1.0, %v1070
    %v1072 = vrcp.pop %v1028
    %v1073 = vmul.f32 1.0, %v1072
    %v1074 = vrcp.pop %v1029
    %v1075 = vmul.f32 1.0, %v1074
    %v1076 = vrcp.pop %v1030
    %v1077 = vmul.f32 1.0, %v1076
    %v1078 = vrcp.pop %v1031
    %v1079 = vmul.f32 1.0, %v1078
    %v1080 = vrcp.pop %v1032
    %v1081 = vmul.f32 1.0, %v1080
    %v1082 = vrcp.pop %v1033
    %v1083 = vmul.f32 1.0, %v1082
    %v1084 = vrcp.pop %v1034
    %v1085 = vmul.f32 1.0, %v1084
    %v1086 = vrcp.pop %v1035
    %v1087 = vmul.f32 1.0, %v1086
    %v1088 = vrcp.pop %v1036
    %v1089 = vmul.f32 1.0, %v1088
    %v1090 = vrcp.pop %v1037
    %v1091 = vmul.f32 1.0, %v1090
    %v1092 = vrcp.pop %v1038
    %v1093 = vmul.f32 1.0, %v1092
    %v1094 = vrcp.pop %v1039
    %v1095 = vmul.f32 1.0, %v1094
    %v1096 = vrcp.pop %v1040
    %v1097 = vmul.f32 1.0, %v1096
    %v1098 = vrcp.pop %v1041
    %v1099 = vmul.f32 1.0, %v1098
    %v1100 = vrcp.pop %v1042
    %v1101 = vmul.f32 1.0, %v1100
    %v1102 = vrcp.pop %v1043
    %v1103 = vmul.f32 1.0, %v1102
    %v1104 = vrcp.pop %v1044
    %v1105 = vmul.f32 1.0, %v1104
    %v1106 = vrcp.pop %v1045
    %v1107 = vmul.f32 1.0, %v1106
    %v1108 = vrcp.pop %v1046
    %v1109 = vmul.f32 1.0, %v1108
    %v1110 = vrcp.pop %v1047
    %v1111 = vmul.f32 1.0, %v1110
    %v1112 = vmul.f32 %v1049, 1.442695
    %v1113 = vpow.pop %v1112
    %v1114 = vmul.f32 %v1051, 1.442695
    %v1115 = vpow.pop %v1114
    %v1116 = vmul.f32 %v1053, 1.442695
    %v1117 = vpow.pop %v1116
    %v1118 = vmul.f32 %v1055, 1.442695
    %v1119 = vpow.pop %v1118
    %v1120 = vmul.f32 %v1057, 1.442695
    %v1121 = vpow.pop %v1120
    %v1122 = vmul.f32 %v1059, 1.442695
    %v1123 = vpow.pop %v1122
    %v1124 = vmul.f32 %v1061, 1.442695
    %v1125 = vpow.pop %v1124
    %v1126 = vmul.f32 %v1063, 1.442695
    %v1127 = vpow.pop %v1126
    %v1128 = vmul.f32 %v1065, 1.442695
    %v1129 = vpow.pop %v1128
    %v1130 = vmul.f32 %v1067, 1.442695
    %v1131 = vpow.pop %v1130
    %v1132 = vmul.f32 %v1069, 1.442695
    %v1133 = vpow.pop %v1132
    %v1134 = vmul.f32 %v1071, 1.442695
    %v1135 = vpow.pop %v1134
    %v1136 = vmul.f32 %v1073, 1.442695
    %v1137 = vpow.pop %v1136
    %v1138 = vmul.f32 %v1075, 1.442695
    %v1139 = vpow.pop %v1138
    %v1140 = vmul.f32 %v1077, 1.442695
    %v1141 = vpow.pop %v1140
    %v1142 = vmul.f32 %v1079, 1.442695
    %v1143 = vpow.pop %v1142
    %v1144 = vmul.f32 %v1081, 1.442695
    %v1145 = vpow.pop %v1144
    %v1146 = vmul.f32 %v1083, 1.442695
    %v1147 = vpow.pop %v1146
    %v1148 = vmul.f32 %v1085, 1.442695
    %v1149 = vpow.pop %v1148
    %v1150 = vmul.f32 %v1087, 1.442695
    %v1151 = vpow.pop %v1150
    %v1152 = vmul.f32 %v1089, 1.442695
    %v1153 = vpow.pop %v1152
    %v1154 = vmul.f32 %v1091, 1.442695
    %v1155 = vpow.pop %v1154
    %v1156 = vmul.f32 %v1093, 1.442695
    %v1157 = vpow.pop %v1156
    %v1158 = vmul.f32 %v1095, 1.442695
    %v1159 = vpow.pop %v1158
    %v1160 = vmul.f32 %v1097, 1.442695
    %v1161 = vpow.pop %v1160
    %v1162 = vmul.f32 %v1099, 1.442695
    %v1163 = vpow.pop %v1162
    %v1164 = vmul.f32 %v1101, 1.442695
    %v1165 = vpow.pop %v1164
    %v1166 = vmul.f32 %v1103, 1.442695
    %v1167 = vpow.pop %v1166
    %v1168 = vmul.f32 %v1105, 1.442695
    %v1169 = vpow.pop %v1168
    %v1170 = vmul.f32 %v1107, 1.442695
    %v1171 = vpow.pop %v1170
    %v1172 = vmul.f32 %v1109, 1.442695
    %v1173 = vpow.pop %v1172
    %v1174 = vmul.f32 %v1111, 1.442695
    %v1175 = vpow.pop %v1174
    %v1208 = vlaneseq
    %v1209 = vand.u32 %v1208, 127
    %v1210 = vlaneseq
    %v1211 = vshrl.u32 %v1210, 7
    %v1212 = vsub.s32 %v1209, %v1211
    %v1213 = vrot.slane %v1113, %v1212
    %v1214 = vlaneseq
    %v1215 = vshrl.u32 %v1214, 7
    %v1216 = vsub.s32 %v1209, %v1215
    %v1217 = vrot.slane %v1115, %v1216
    %v1218 = vlaneseq
    %v1219 = vshrl.u32 %v1218, 7
    %v1220 = vsub.s32 %v1209, %v1219
    %v1221 = vrot.slane %v1117, %v1220
    %v1222 = vlaneseq
    %v1223 = vshrl.u32 %v1222, 7
    %v1224 = vsub.s32 %v1209, %v1223
    %v1225 = vrot.slane %v1119, %v1224
    %v1226 = vlaneseq
    %v1227 = vshrl.u32 %v1226, 7
    %v1228 = vsub.s32 %v1209, %v1227
    %v1229 = vrot.slane %v1121, %v1228
    %v1230 = vlaneseq
    %v1231 = vshrl.u32 %v1230, 7
    %v1232 = vsub.s32 %v1209, %v1231
    %v1233 = vrot.slane %v1123, %v1232
    %v1234 = vlaneseq
    %v1235 = vshrl.u32 %v1234, 7
    %v1236 = vsub.s32 %v1209, %v1235
    %v1237 = vrot.slane %v1125, %v1236
    %v1238 = vlaneseq
    %v1239 = vshrl.u32 %v1238, 7
    %v1240 = vsub.s32 %v1209, %v1239
    %v1241 = vrot.slane %v1127, %v1240
    %v1242 = vlaneseq
    %v1243 = vshrl.u32 %v1242, 7
    %v1244 = vsub.s32 %v1209, %v1243
    %v1245 = vrot.slane %v1129, %v1244
    %v1246 = vlaneseq
    %v1247 = vshrl.u32 %v1246, 7
    %v1248 = vsub.s32 %v1209, %v1247
    %v1249 = vrot.slane %v1131, %v1248
    %v1250 = vlaneseq
    %v1251 = vshrl.u32 %v1250, 7
    %v1252 = vsub.s32 %v1209, %v1251
    %v1253 = vrot.slane %v1133, %v1252
    %v1254 = vlaneseq
    %v1255 = vshrl.u32 %v1254, 7
    %v1256 = vsub.s32 %v1209, %v1255
    %v1257 = vrot.slane %v1135, %v1256
    %v1258 = vlaneseq
    %v1259 = vshrl.u32 %v1258, 7
    %v1260 = vsub.s32 %v1209, %v1259
    %v1261 = vrot.slane %v1137, %v1260
    %v1262 = vlaneseq
    %v1263 = vshrl.u32 %v1262, 7
    %v1264 = vsub.s32 %v1209, %v1263
    %v1265 = vrot.slane %v1139, %v1264
    %v1266 = vlaneseq
    %v1267 = vshrl.u32 %v1266, 7
    %v1268 = vsub.s32 %v1209, %v1267
    %v1269 = vrot.slane %v1141, %v1268
    %v1270 = vlaneseq
    %v1271 = vshrl.u32 %v1270, 7
    %v1272 = vsub.s32 %v1209, %v1271
    %v1273 = vrot.slane %v1143, %v1272
    %v1274 = vlaneseq
    %v1275 = vshrl.u32 %v1274, 7
    %v1276 = vsub.s32 %v1209, %v1275
    %v1277 = vrot.slane %v1145, %v1276
    %v1278 = vlaneseq
    %v1279 = vshrl.u32 %v1278, 7
    %v1280 = vsub.s32 %v1209, %v1279
    %v1281 = vrot.slane %v1147, %v1280
    %v1282 = vlaneseq
    %v1283 = vshrl.u32 %v1282, 7
    %v1284 = vsub.s32 %v1209, %v1283
    %v1285 = vrot.slane %v1149, %v1284
    %v1286 = vlaneseq
    %v1287 = vshrl.u32 %v1286, 7
    %v1288 = vsub.s32 %v1209, %v1287
    %v1289 = vrot.slane %v1151, %v1288
    %v1290 = vlaneseq
    %v1291 = vshrl.u32 %v1290, 7
    %v1292 = vsub.s32 %v1209, %v1291
    %v1293 = vrot.slane %v1153, %v1292
    %v1294 = vlaneseq
    %v1295 = vshrl.u32 %v1294, 7
    %v1296 = vsub.s32 %v1209, %v1295
    %v1297 = vrot.slane %v1155, %v1296
    %v1298 = vlaneseq
    %v1299 = vshrl.u32 %v1298, 7
    %v1300 = vsub.s32 %v1209, %v1299
    %v1301 = vrot.slane %v1157, %v1300
    %v1302 = vlaneseq
    %v1303 = vshrl.u32 %v1302, 7
    %v1304 = vsub.s32 %v1209, %v1303
    %v1305 = vrot.slane %v1159, %v1304
    %v1306 = vlaneseq
    %v1307 = vshrl.u32 %v1306, 7
    %v1308 = vsub.s32 %v1209, %v1307
    %v1309 = vrot.slane %v1161, %v1308
    %v1310 = vlaneseq
    %v1311 = vshrl.u32 %v1310, 7
    %v1312 = vsub.s32 %v1209, %v1311
    %v1313 = vrot.slane %v1163, %v1312
    %v1314 = vlaneseq
    %v1315 = vshrl.u32 %v1314, 7
    %v1316 = vsub.s32 %v1209, %v1315
    %v1317 = vrot.slane %v1165, %v1316
    %v1318 = vlaneseq
    %v1319 = vshrl.u32 %v1318, 7
    %v1320 = vsub.s32 %v1209, %v1319
    %v1321 = vrot.slane %v1167, %v1320
    %v1322 = vlaneseq
    %v1323 = vshrl.u32 %v1322, 7
    %v1324 = vsub.s32 %v1209, %v1323
    %v1325 = vrot.slane %v1169, %v1324
    %v1326 = vlaneseq
    %v1327 = vshrl.u32 %v1326, 7
    %v1328 = vsub.s32 %v1209, %v1327
    %v1329 = vrot.slane %v1171, %v1328
    %v1330 = vlaneseq
    %v1331 = vshrl.u32 %v1330, 7
    %v1332 = vsub.s32 %v1209, %v1331
    %v1333 = vrot.slane %v1173, %v1332
    %v1334 = vlaneseq
    %v1335 = vshrl.u32 %v1334, 7
    %v1336 = vsub.s32 %v1209, %v1335
    %v1337 = vrot.slane %v1175, %v1336
    %vm1338 = vcmask 1041409
    %v1339 = vsel %vm1338, %v1217, %v1213
    %vm1340 = vcmask 1042434
    %v1341 = vsel %vm1340, %v1221, %v1339
    %vm1342 = vcmask 1043459
    %v1343 = vsel %vm1342, %v1225, %v1341
    %vm1344 = vcmask 1044484
    %v1345 = vsel %vm1344, %v1229, %v1343
    %vm1346 = vcmask 1045509
    %v1347 = vsel %vm1346, %v1233, %v1345
    %vm1348 = vcmask 1046534
    %v1349 = vsel %vm1348, %v1237, %v1347
    %vm1350 = vcmask 1047559
    %v1351 = vsel %vm1350, %v1241, %v1349
    %v1352 = vsel %vm1338, %v1249, %v1245
    %v1353 = vsel %vm1340, %v1253, %v1352
    %v1354 = vsel %vm1342, %v1257, %v1353
    %v1355 = vsel %vm1344, %v1261, %v1354
    %v1356 = vsel %vm1346, %v1265, %v1355
    %v1357 = vsel %vm1348, %v1269, %v1356
    %v1358 = vsel %vm1350, %v1273, %v1357
    %v1359 = vsel %vm1338, %v1281, %v1277
    %v1360 = vsel %vm1340, %v1285, %v1359
    %v1361 = vsel %vm1342, %v1289, %v1360
    %v1362 = vsel %vm1344, %v1293, %v1361
    %v1363 = vsel %vm1346, %v1297, %v1362
    %v1364 = vsel %vm1348, %v1301, %v1363
    %v1365 = vsel %vm1350, %v1305, %v1364
    %v1366 = vsel %vm1338, %v1313, %v1309
    %v1367 = vsel %vm1340, %v1317, %v1366
    %v1368 = vsel %vm1342, %v1321, %v1367
    %v1369 = vsel %vm1344, %v1325, %v1368
    %v1370 = vsel %vm1346, %v1329, %v1369
    %v1371 = vsel %vm1348, %v1333, %v1370
    %v1372 = vsel %vm1350, %v1337, %v1371
    %vm1377 = vcmask 64512
    %v1378 = vsel %vm1377, %v1351, 0.0
    %1379 = vadd.xlane.f32.xlu0 %v1378
    %v1380 = vpop.xlane.xlu0 %1379
    %v1381 = vsel %vm1377, %v1358, 0.0
    %1382 = vadd.xlane.f32.xlu0 %v1381
    %v1383 = vpop.xlane.xlu0 %1382
    %v1384 = vsel %vm1377, %v1365, 0.0
    %1385 = vadd.xlane.f32.xlu0 %v1384
    %v1386 = vpop.xlane.xlu0 %1385
    %v1387 = vsel %vm1377, %v1372, 0.0
    %1388 = vadd.xlane.f32.xlu0 %v1387
    %v1389 = vpop.xlane.xlu0 %1388
    %v1390 = vrcp.pop %v1380
    %v1391 = vrcp.pop %v1383
    %v1392 = vrcp.pop %v1386
    %v1393 = vrcp.pop %v1389
    %v1398 = vlaneseq
    %v1399 = vshrl.u32 %v1398, 7
    %v1400 = vsub.s32 0, %v1399
    %v1401 = vrot.slane %v1390, %v1400
    %v1402 = vlaneseq
    %v1403 = vshrl.u32 %v1402, 7
    %v1404 = vsub.s32 1, %v1403
    %v1405 = vrot.slane %v1390, %v1404
    %v1406 = vlaneseq
    %v1407 = vshrl.u32 %v1406, 7
    %v1408 = vsub.s32 2, %v1407
    %v1409 = vrot.slane %v1390, %v1408
    %v1410 = vlaneseq
    %v1411 = vshrl.u32 %v1410, 7
    %v1412 = vsub.s32 3, %v1411
    %v1413 = vrot.slane %v1390, %v1412
    %v1414 = vlaneseq
    %v1415 = vshrl.u32 %v1414, 7
    %v1416 = vsub.s32 4, %v1415
    %v1417 = vrot.slane %v1390, %v1416
    %v1418 = vlaneseq
    %v1419 = vshrl.u32 %v1418, 7
    %v1420 = vsub.s32 5, %v1419
    %v1421 = vrot.slane %v1390, %v1420
    %v1422 = vlaneseq
    %v1423 = vshrl.u32 %v1422, 7
    %v1424 = vsub.s32 6, %v1423
    %v1425 = vrot.slane %v1390, %v1424
    %v1426 = vlaneseq
    %v1427 = vshrl.u32 %v1426, 7
    %v1428 = vsub.s32 7, %v1427
    %v1429 = vrot.slane %v1390, %v1428
    %v1430 = vlaneseq
    %v1431 = vshrl.u32 %v1430, 7
    %v1432 = vsub.s32 0, %v1431
    %v1433 = vrot.slane %v1391, %v1432
    %v1434 = vlaneseq
    %v1435 = vshrl.u32 %v1434, 7
    %v1436 = vsub.s32 1, %v1435
    %v1437 = vrot.slane %v1391, %v1436
    %v1438 = vlaneseq
    %v1439 = vshrl.u32 %v1438, 7
    %v1440 = vsub.s32 2, %v1439
    %v1441 = vrot.slane %v1391, %v1440
    %v1442 = vlaneseq
    %v1443 = vshrl.u32 %v1442, 7
    %v1444 = vsub.s32 3, %v1443
    %v1445 = vrot.slane %v1391, %v1444
    %v1446 = vlaneseq
    %v1447 = vshrl.u32 %v1446, 7
    %v1448 = vsub.s32 4, %v1447
    %v1449 = vrot.slane %v1391, %v1448
    %v1450 = vlaneseq
    %v1451 = vshrl.u32 %v1450, 7
    %v1452 = vsub.s32 5, %v1451
    %v1453 = vrot.slane %v1391, %v1452
    %v1454 = vlaneseq
    %v1455 = vshrl.u32 %v1454, 7
    %v1456 = vsub.s32 6, %v1455
    %v1457 = vrot.slane %v1391, %v1456
    %v1458 = vlaneseq
    %v1459 = vshrl.u32 %v1458, 7
    %v1460 = vsub.s32 7, %v1459
    %v1461 = vrot.slane %v1391, %v1460
    %v1462 = vlaneseq
    %v1463 = vshrl.u32 %v1462, 7
    %v1464 = vsub.s32 0, %v1463
    %v1465 = vrot.slane %v1392, %v1464
    %v1466 = vlaneseq
    %v1467 = vshrl.u32 %v1466, 7
    %v1468 = vsub.s32 1, %v1467
    %v1469 = vrot.slane %v1392, %v1468
    %v1470 = vlaneseq
    %v1471 = vshrl.u32 %v1470, 7
    %v1472 = vsub.s32 2, %v1471
    %v1473 = vrot.slane %v1392, %v1472
    %v1474 = vlaneseq
    %v1475 = vshrl.u32 %v1474, 7
    %v1476 = vsub.s32 3, %v1475
    %v1477 = vrot.slane %v1392, %v1476
    %v1478 = vlaneseq
    %v1479 = vshrl.u32 %v1478, 7
    %v1480 = vsub.s32 4, %v1479
    %v1481 = vrot.slane %v1392, %v1480
    %v1482 = vlaneseq
    %v1483 = vshrl.u32 %v1482, 7
    %v1484 = vsub.s32 5, %v1483
    %v1485 = vrot.slane %v1392, %v1484
    %v1486 = vlaneseq
    %v1487 = vshrl.u32 %v1486, 7
    %v1488 = vsub.s32 6, %v1487
    %v1489 = vrot.slane %v1392, %v1488
    %v1490 = vlaneseq
    %v1491 = vshrl.u32 %v1490, 7
    %v1492 = vsub.s32 7, %v1491
    %v1493 = vrot.slane %v1392, %v1492
    %v1494 = vlaneseq
    %v1495 = vshrl.u32 %v1494, 7
    %v1496 = vsub.s32 0, %v1495
    %v1497 = vrot.slane %v1393, %v1496
    %v1498 = vlaneseq
    %v1499 = vshrl.u32 %v1498, 7
    %v1500 = vsub.s32 1, %v1499
    %v1501 = vrot.slane %v1393, %v1500
    %v1502 = vlaneseq
    %v1503 = vshrl.u32 %v1502, 7
    %v1504 = vsub.s32 2, %v1503
    %v1505 = vrot.slane %v1393, %v1504
    %v1506 = vlaneseq
    %v1507 = vshrl.u32 %v1506, 7
    %v1508 = vsub.s32 3, %v1507
    %v1509 = vrot.slane %v1393, %v1508
    %v1510 = vlaneseq
    %v1511 = vshrl.u32 %v1510, 7
    %v1512 = vsub.s32 4, %v1511
    %v1513 = vrot.slane %v1393, %v1512
    %v1514 = vlaneseq
    %v1515 = vshrl.u32 %v1514, 7
    %v1516 = vsub.s32 5, %v1515
    %v1517 = vrot.slane %v1393, %v1516
    %v1518 = vlaneseq
    %v1519 = vshrl.u32 %v1518, 7
    %v1520 = vsub.s32 6, %v1519
    %v1521 = vrot.slane %v1393, %v1520
    %v1522 = vlaneseq
    %v1523 = vshrl.u32 %v1522, 7
    %v1524 = vsub.s32 7, %v1523
    %v1525 = vrot.slane %v1393, %v1524
    %v1558 = vmul.f32 %v1113, %v1401
    %v1559 = vmul.f32 %v1115, %v1405
    %v1560 = vmul.f32 %v1117, %v1409
    %v1561 = vmul.f32 %v1119, %v1413
    %v1562 = vmul.f32 %v1121, %v1417
    %v1563 = vmul.f32 %v1123, %v1421
    %v1564 = vmul.f32 %v1125, %v1425
    %v1565 = vmul.f32 %v1127, %v1429
    %v1566 = vmul.f32 %v1129, %v1433
    %v1567 = vmul.f32 %v1131, %v1437
    %v1568 = vmul.f32 %v1133, %v1441
    %v1569 = vmul.f32 %v1135, %v1445
    %v1570 = vmul.f32 %v1137, %v1449
    %v1571 = vmul.f32 %v1139, %v1453
    %v1572 = vmul.f32 %v1141, %v1457
    %v1573 = vmul.f32 %v1143, %v1461
    %v1574 = vmul.f32 %v1145, %v1465
    %v1575 = vmul.f32 %v1147, %v1469
    %v1576 = vmul.f32 %v1149, %v1473
    %v1577 = vmul.f32 %v1151, %v1477
    %v1578 = vmul.f32 %v1153, %v1481
    %v1579 = vmul.f32 %v1155, %v1485
    %v1580 = vmul.f32 %v1157, %v1489
    %v1581 = vmul.f32 %v1159, %v1493
    %v1582 = vmul.f32 %v1161, %v1497
    %v1583 = vmul.f32 %v1163, %v1501
    %v1584 = vmul.f32 %v1165, %v1505
    %v1585 = vmul.f32 %v1167, %v1509
    %v1586 = vmul.f32 %v1169, %v1513
    %v1587 = vmul.f32 %v1171, %v1517
    %v1588 = vmul.f32 %v1173, %v1521
    %v1589 = vmul.f32 %v1175, %v1525
    %v1590 = vld [vmem:[%s1] sm:$0xff]
    %v1591 = vld [vmem:[%s1 + $0x8] sm:$0xff]
    %v1592 = vld [vmem:[%s1 + $0x10] sm:$0xff]
    %v1593 = vld [vmem:[%s1 + $0x18] sm:$0xff]
    %v1594 = vld [vmem:[%s1 + $0x20] sm:$0xff]
    %v1595 = vld [vmem:[%s1 + $0x28] sm:$0xff]
    %v1596 = vld [vmem:[%s1 + $0x30] sm:$0xff]
    %v1597 = vld [vmem:[%s1 + $0x38] sm:$0xff]
    %v1598 = vld [vmem:[%s1 + $0x40] sm:$0xff]
    %v1599 = vld [vmem:[%s1 + $0x48] sm:$0xff]
    %v1600 = vld [vmem:[%s1 + $0x50] sm:$0xff]
    %v1601 = vld [vmem:[%s1 + $0x58] sm:$0xff]
    %v1602 = vld [vmem:[%s1 + $0x60] sm:$0xff]
    %v1603 = vld [vmem:[%s1 + $0x68] sm:$0xff]
    %v1604 = vld [vmem:[%s1 + $0x70] sm:$0xff]
    %v1605 = vld [vmem:[%s1 + $0x78] sm:$0xff]
    %v1606 = vld [vmem:[%s1 + $0x80] sm:$0xff]
    %v1607 = vld [vmem:[%s1 + $0x88] sm:$0xff]
    %v1608 = vld [vmem:[%s1 + $0x90] sm:$0xff]
    %v1609 = vld [vmem:[%s1 + $0x98] sm:$0xff]
    %v1610 = vld [vmem:[%s1 + $0xa0] sm:$0xff]
    %v1611 = vld [vmem:[%s1 + $0xa8] sm:$0xff]
    %v1612 = vld [vmem:[%s1 + $0xb0] sm:$0xff]
    %v1613 = vld [vmem:[%s1 + $0xb8] sm:$0xff]
    %v1614 = vld [vmem:[%s1 + $0xc0] sm:$0xff]
    %v1615 = vld [vmem:[%s1 + $0xc8] sm:$0xff]
    %v1616 = vld [vmem:[%s1 + $0xd0] sm:$0xff]
    %v1617 = vld [vmem:[%s1 + $0xd8] sm:$0xff]
    %v1618 = vld [vmem:[%s1 + $0xe0] sm:$0xff]
    %v1619 = vld [vmem:[%s1 + $0xe8] sm:$0xff]
    %v1620 = vld [vmem:[%s1 + $0xf0] sm:$0xff]
    %v1621 = vld [vmem:[%s1 + $0xf8] sm:$0xff]
    %1623 = vset.pattern.permute.xlu0 0
    %1624 = vperm.xlu0 %1623, %v1558
    %v1625 = vpop.permute.xlu0 %1624
    %1628 = vset.pattern.permute.xlu0 0
    %1629 = vperm.xlu0 %1628, %v1559
    %v1630 = vpop.permute.xlu0 %1629
    %1633 = vset.pattern.permute.xlu0 0
    %1634 = vperm.xlu0 %1633, %v1560
    %v1635 = vpop.permute.xlu0 %1634
    %1638 = vset.pattern.permute.xlu0 0
    %1639 = vperm.xlu0 %1638, %v1561
    %v1640 = vpop.permute.xlu0 %1639
    %1643 = vset.pattern.permute.xlu0 0
    %1644 = vperm.xlu0 %1643, %v1562
    %v1645 = vpop.permute.xlu0 %1644
    %1648 = vset.pattern.permute.xlu0 0
    %1649 = vperm.xlu0 %1648, %v1563
    %v1650 = vpop.permute.xlu0 %1649
    %1653 = vset.pattern.permute.xlu0 0
    %1654 = vperm.xlu0 %1653, %v1564
    %v1655 = vpop.permute.xlu0 %1654
    %1658 = vset.pattern.permute.xlu0 0
    %1659 = vperm.xlu0 %1658, %v1565
    %v1660 = vpop.permute.xlu0 %1659
    %1663 = vset.pattern.permute.xlu0 0
    %1664 = vperm.xlu0 %1663, %v1566
    %v1665 = vpop.permute.xlu0 %1664
    %1668 = vset.pattern.permute.xlu0 0
    %1669 = vperm.xlu0 %1668, %v1567
    %v1670 = vpop.permute.xlu0 %1669
    %1673 = vset.pattern.permute.xlu0 0
    %1674 = vperm.xlu0 %1673, %v1568
    %v1675 = vpop.permute.xlu0 %1674
    %1678 = vset.pattern.permute.xlu0 0
    %1679 = vperm.xlu0 %1678, %v1569
    %v1680 = vpop.permute.xlu0 %1679
    %1683 = vset.pattern.permute.xlu0 0
    %1684 = vperm.xlu0 %1683, %v1570
    %v1685 = vpop.permute.xlu0 %1684
    %1688 = vset.pattern.permute.xlu0 0
    %1689 = vperm.xlu0 %1688, %v1571
    %v1690 = vpop.permute.xlu0 %1689
    %1693 = vset.pattern.permute.xlu0 0
    %1694 = vperm.xlu0 %1693, %v1572
    %v1695 = vpop.permute.xlu0 %1694
    %1698 = vset.pattern.permute.xlu0 0
    %1699 = vperm.xlu0 %1698, %v1573
    %v1700 = vpop.permute.xlu0 %1699
    %1703 = vset.pattern.permute.xlu0 0
    %1704 = vperm.xlu0 %1703, %v1574
    %v1705 = vpop.permute.xlu0 %1704
    %1708 = vset.pattern.permute.xlu0 0
    %1709 = vperm.xlu0 %1708, %v1575
    %v1710 = vpop.permute.xlu0 %1709
    %1713 = vset.pattern.permute.xlu0 0
    %1714 = vperm.xlu0 %1713, %v1576
    %v1715 = vpop.permute.xlu0 %1714
    %1718 = vset.pattern.permute.xlu0 0
    %1719 = vperm.xlu0 %1718, %v1577
    %v1720 = vpop.permute.xlu0 %1719
    %1723 = vset.pattern.permute.xlu0 0
    %1724 = vperm.xlu0 %1723, %v1578
    %v1725 = vpop.permute.xlu0 %1724
    %1728 = vset.pattern.permute.xlu0 0
    %1729 = vperm.xlu0 %1728, %v1579
    %v1730 = vpop.permute.xlu0 %1729
    %1733 = vset.pattern.permute.xlu0 0
    %1734 = vperm.xlu0 %1733, %v1580
    %v1735 = vpop.permute.xlu0 %1734
    %1738 = vset.pattern.permute.xlu0 0
    %1739 = vperm.xlu0 %1738, %v1581
    %v1740 = vpop.permute.xlu0 %1739
    %1743 = vset.pattern.permute.xlu0 0
    %1744 = vperm.xlu0 %1743, %v1582
    %v1745 = vpop.permute.xlu0 %1744
    %1748 = vset.pattern.permute.xlu0 0
    %1749 = vperm.xlu0 %1748, %v1583
    %v1750 = vpop.permute.xlu0 %1749
    %1753 = vset.pattern.permute.xlu0 0
    %1754 = vperm.xlu0 %1753, %v1584
    %v1755 = vpop.permute.xlu0 %1754
    %1758 = vset.pattern.permute.xlu0 0
    %1759 = vperm.xlu0 %1758, %v1585
    %v1760 = vpop.permute.xlu0 %1759
    %1763 = vset.pattern.permute.xlu0 0
    %1764 = vperm.xlu0 %1763, %v1586
    %v1765 = vpop.permute.xlu0 %1764
    %1768 = vset.pattern.permute.xlu0 0
    %1769 = vperm.xlu0 %1768, %v1587
    %v1770 = vpop.permute.xlu0 %1769
    %1773 = vset.pattern.permute.xlu0 0
    %1774 = vperm.xlu0 %1773, %v1588
    %v1775 = vpop.permute.xlu0 %1774
    %1778 = vset.pattern.permute.xlu0 0
    %1779 = vperm.xlu0 %1778, %v1589
    %v1780 = vpop.permute.xlu0 %1779
    %v1782 = vmul.f32 %v1625, %v1590
    %v1783 = vmul.f32 %v1630, %v1591
    %v1784 = vmul.f32 %v1635, %v1592
    %v1785 = vmul.f32 %v1640, %v1593
    %v1786 = vmul.f32 %v1645, %v1594
    %v1787 = vmul.f32 %v1650, %v1595
    %v1788 = vmul.f32 %v1655, %v1596
    %v1789 = vmul.f32 %v1660, %v1597
    %v1790 = vmul.f32 %v1665, %v1598
    %v1791 = vmul.f32 %v1670, %v1599
    %v1792 = vmul.f32 %v1675, %v1600
    %v1793 = vmul.f32 %v1680, %v1601
    %v1794 = vmul.f32 %v1685, %v1602
    %v1795 = vmul.f32 %v1690, %v1603
    %v1796 = vmul.f32 %v1695, %v1604
    %v1797 = vmul.f32 %v1700, %v1605
    %v1798 = vmul.f32 %v1705, %v1606
    %v1799 = vmul.f32 %v1710, %v1607
    %v1800 = vmul.f32 %v1715, %v1608
    %v1801 = vmul.f32 %v1720, %v1609
    %v1802 = vmul.f32 %v1725, %v1610
    %v1803 = vmul.f32 %v1730, %v1611
    %v1804 = vmul.f32 %v1735, %v1612
    %v1805 = vmul.f32 %v1740, %v1613
    %v1806 = vmul.f32 %v1745, %v1614
    %v1807 = vmul.f32 %v1750, %v1615
    %v1808 = vmul.f32 %v1755, %v1616
    %v1809 = vmul.f32 %v1760, %v1617
    %v1810 = vmul.f32 %v1765, %v1618
    %v1811 = vmul.f32 %v1770, %v1619
    %v1812 = vmul.f32 %v1775, %v1620
    %v1813 = vmul.f32 %v1780, %v1621
    %v1814 = vsel %vm431, %v1782, 0.0
    %v1815 = vrot.slane %v1814, 4
    %v1816 = vadd.f32 %v1814, %v1815
    %v1817 = vrot.slane %v1816, 2
    %v1818 = vadd.f32 %v1816, %v1817
    %v1819 = vrot.slane %v1818, 1
    %v1820 = vadd.f32 %v1818, %v1819
    %v1821 = vsel %vm431, %v1783, 0.0
    %v1822 = vrot.slane %v1821, 4
    %v1823 = vadd.f32 %v1821, %v1822
    %v1824 = vrot.slane %v1823, 2
    %v1825 = vadd.f32 %v1823, %v1824
    %v1826 = vrot.slane %v1825, 1
    %v1827 = vadd.f32 %v1825, %v1826
    %v1828 = vsel %vm431, %v1784, 0.0
    %v1829 = vrot.slane %v1828, 4
    %v1830 = vadd.f32 %v1828, %v1829
    %v1831 = vrot.slane %v1830, 2
    %v1832 = vadd.f32 %v1830, %v1831
    %v1833 = vrot.slane %v1832, 1
    %v1834 = vadd.f32 %v1832, %v1833
    %v1835 = vsel %vm431, %v1785, 0.0
    %v1836 = vrot.slane %v1835, 4
    %v1837 = vadd.f32 %v1835, %v1836
    %v1838 = vrot.slane %v1837, 2
    %v1839 = vadd.f32 %v1837, %v1838
    %v1840 = vrot.slane %v1839, 1
    %v1841 = vadd.f32 %v1839, %v1840
    %v1842 = vsel %vm431, %v1786, 0.0
    %v1843 = vrot.slane %v1842, 4
    %v1844 = vadd.f32 %v1842, %v1843
    %v1845 = vrot.slane %v1844, 2
    %v1846 = vadd.f32 %v1844, %v1845
    %v1847 = vrot.slane %v1846, 1
    %v1848 = vadd.f32 %v1846, %v1847
    %v1849 = vsel %vm431, %v1787, 0.0
    %v1850 = vrot.slane %v1849, 4
    %v1851 = vadd.f32 %v1849, %v1850
    %v1852 = vrot.slane %v1851, 2
    %v1853 = vadd.f32 %v1851, %v1852
    %v1854 = vrot.slane %v1853, 1
    %v1855 = vadd.f32 %v1853, %v1854
    %v1856 = vsel %vm431, %v1788, 0.0
    %v1857 = vrot.slane %v1856, 4
    %v1858 = vadd.f32 %v1856, %v1857
    %v1859 = vrot.slane %v1858, 2
    %v1860 = vadd.f32 %v1858, %v1859
    %v1861 = vrot.slane %v1860, 1
    %v1862 = vadd.f32 %v1860, %v1861
    %v1863 = vsel %vm431, %v1789, 0.0
    %v1864 = vrot.slane %v1863, 4
    %v1865 = vadd.f32 %v1863, %v1864
    %v1866 = vrot.slane %v1865, 2
    %v1867 = vadd.f32 %v1865, %v1866
    %v1868 = vrot.slane %v1867, 1
    %v1869 = vadd.f32 %v1867, %v1868
    %v1870 = vsel %vm431, %v1790, 0.0
    %v1871 = vrot.slane %v1870, 4
    %v1872 = vadd.f32 %v1870, %v1871
    %v1873 = vrot.slane %v1872, 2
    %v1874 = vadd.f32 %v1872, %v1873
    %v1875 = vrot.slane %v1874, 1
    %v1876 = vadd.f32 %v1874, %v1875
    %v1877 = vsel %vm431, %v1791, 0.0
    %v1878 = vrot.slane %v1877, 4
    %v1879 = vadd.f32 %v1877, %v1878
    %v1880 = vrot.slane %v1879, 2
    %v1881 = vadd.f32 %v1879, %v1880
    %v1882 = vrot.slane %v1881, 1
    %v1883 = vadd.f32 %v1881, %v1882
    %v1884 = vsel %vm431, %v1792, 0.0
    %v1885 = vrot.slane %v1884, 4
    %v1886 = vadd.f32 %v1884, %v1885
    %v1887 = vrot.slane %v1886, 2
    %v1888 = vadd.f32 %v1886, %v1887
    %v1889 = vrot.slane %v1888, 1
    %v1890 = vadd.f32 %v1888, %v1889
    %v1891 = vsel %vm431, %v1793, 0.0
    %v1892 = vrot.slane %v1891, 4
    %v1893 = vadd.f32 %v1891, %v1892
    %v1894 = vrot.slane %v1893, 2
    %v1895 = vadd.f32 %v1893, %v1894
    %v1896 = vrot.slane %v1895, 1
    %v1897 = vadd.f32 %v1895, %v1896
    %v1898 = vsel %vm431, %v1794, 0.0
    %v1899 = vrot.slane %v1898, 4
    %v1900 = vadd.f32 %v1898, %v1899
    %v1901 = vrot.slane %v1900, 2
    %v1902 = vadd.f32 %v1900, %v1901
    %v1903 = vrot.slane %v1902, 1
    %v1904 = vadd.f32 %v1902, %v1903
    %v1905 = vsel %vm431, %v1795, 0.0
    %v1906 = vrot.slane %v1905, 4
    %v1907 = vadd.f32 %v1905, %v1906
    %v1908 = vrot.slane %v1907, 2
    %v1909 = vadd.f32 %v1907, %v1908
    %v1910 = vrot.slane %v1909, 1
    %v1911 = vadd.f32 %v1909, %v1910
    %v1912 = vsel %vm431, %v1796, 0.0
    %v1913 = vrot.slane %v1912, 4
    %v1914 = vadd.f32 %v1912, %v1913
    %v1915 = vrot.slane %v1914, 2
    %v1916 = vadd.f32 %v1914, %v1915
    %v1917 = vrot.slane %v1916, 1
    %v1918 = vadd.f32 %v1916, %v1917
    %v1919 = vsel %vm431, %v1797, 0.0
    %v1920 = vrot.slane %v1919, 4
    %v1921 = vadd.f32 %v1919, %v1920
    %v1922 = vrot.slane %v1921, 2
    %v1923 = vadd.f32 %v1921, %v1922
    %v1924 = vrot.slane %v1923, 1
    %v1925 = vadd.f32 %v1923, %v1924
    %v1926 = vsel %vm431, %v1798, 0.0
    %v1927 = vrot.slane %v1926, 4
    %v1928 = vadd.f32 %v1926, %v1927
    %v1929 = vrot.slane %v1928, 2
    %v1930 = vadd.f32 %v1928, %v1929
    %v1931 = vrot.slane %v1930, 1
    %v1932 = vadd.f32 %v1930, %v1931
    %v1933 = vsel %vm431, %v1799, 0.0
    %v1934 = vrot.slane %v1933, 4
    %v1935 = vadd.f32 %v1933, %v1934
    %v1936 = vrot.slane %v1935, 2
    %v1937 = vadd.f32 %v1935, %v1936
    %v1938 = vrot.slane %v1937, 1
    %v1939 = vadd.f32 %v1937, %v1938
    %v1940 = vsel %vm431, %v1800, 0.0
    %v1941 = vrot.slane %v1940, 4
    %v1942 = vadd.f32 %v1940, %v1941
    %v1943 = vrot.slane %v1942, 2
    %v1944 = vadd.f32 %v1942, %v1943
    %v1945 = vrot.slane %v1944, 1
    %v1946 = vadd.f32 %v1944, %v1945
    %v1947 = vsel %vm431, %v1801, 0.0
    %v1948 = vrot.slane %v1947, 4
    %v1949 = vadd.f32 %v1947, %v1948
    %v1950 = vrot.slane %v1949, 2
    %v1951 = vadd.f32 %v1949, %v1950
    %v1952 = vrot.slane %v1951, 1
    %v1953 = vadd.f32 %v1951, %v1952
    %v1954 = vsel %vm431, %v1802, 0.0
    %v1955 = vrot.slane %v1954, 4
    %v1956 = vadd.f32 %v1954, %v1955
    %v1957 = vrot.slane %v1956, 2
    %v1958 = vadd.f32 %v1956, %v1957
    %v1959 = vrot.slane %v1958, 1
    %v1960 = vadd.f32 %v1958, %v1959
    %v1961 = vsel %vm431, %v1803, 0.0
    %v1962 = vrot.slane %v1961, 4
    %v1963 = vadd.f32 %v1961, %v1962
    %v1964 = vrot.slane %v1963, 2
    %v1965 = vadd.f32 %v1963, %v1964
    %v1966 = vrot.slane %v1965, 1
    %v1967 = vadd.f32 %v1965, %v1966
    %v1968 = vsel %vm431, %v1804, 0.0
    %v1969 = vrot.slane %v1968, 4
    %v1970 = vadd.f32 %v1968, %v1969
    %v1971 = vrot.slane %v1970, 2
    %v1972 = vadd.f32 %v1970, %v1971
    %v1973 = vrot.slane %v1972, 1
    %v1974 = vadd.f32 %v1972, %v1973
    %v1975 = vsel %vm431, %v1805, 0.0
    %v1976 = vrot.slane %v1975, 4
    %v1977 = vadd.f32 %v1975, %v1976
    %v1978 = vrot.slane %v1977, 2
    %v1979 = vadd.f32 %v1977, %v1978
    %v1980 = vrot.slane %v1979, 1
    %v1981 = vadd.f32 %v1979, %v1980
    %v1982 = vsel %vm431, %v1806, 0.0
    %v1983 = vrot.slane %v1982, 4
    %v1984 = vadd.f32 %v1982, %v1983
    %v1985 = vrot.slane %v1984, 2
    %v1986 = vadd.f32 %v1984, %v1985
    %v1987 = vrot.slane %v1986, 1
    %v1988 = vadd.f32 %v1986, %v1987
    %v1989 = vsel %vm431, %v1807, 0.0
    %v1990 = vrot.slane %v1989, 4
    %v1991 = vadd.f32 %v1989, %v1990
    %v1992 = vrot.slane %v1991, 2
    %v1993 = vadd.f32 %v1991, %v1992
    %v1994 = vrot.slane %v1993, 1
    %v1995 = vadd.f32 %v1993, %v1994
    %v1996 = vsel %vm431, %v1808, 0.0
    %v1997 = vrot.slane %v1996, 4
    %v1998 = vadd.f32 %v1996, %v1997
    %v1999 = vrot.slane %v1998, 2
    %v2000 = vadd.f32 %v1998, %v1999
    %v2001 = vrot.slane %v2000, 1
    %v2002 = vadd.f32 %v2000, %v2001
    %v2003 = vsel %vm431, %v1809, 0.0
    %v2004 = vrot.slane %v2003, 4
    %v2005 = vadd.f32 %v2003, %v2004
    %v2006 = vrot.slane %v2005, 2
    %v2007 = vadd.f32 %v2005, %v2006
    %v2008 = vrot.slane %v2007, 1
    %v2009 = vadd.f32 %v2007, %v2008
    %v2010 = vsel %vm431, %v1810, 0.0
    %v2011 = vrot.slane %v2010, 4
    %v2012 = vadd.f32 %v2010, %v2011
    %v2013 = vrot.slane %v2012, 2
    %v2014 = vadd.f32 %v2012, %v2013
    %v2015 = vrot.slane %v2014, 1
    %v2016 = vadd.f32 %v2014, %v2015
    %v2017 = vsel %vm431, %v1811, 0.0
    %v2018 = vrot.slane %v2017, 4
    %v2019 = vadd.f32 %v2017, %v2018
    %v2020 = vrot.slane %v2019, 2
    %v2021 = vadd.f32 %v2019, %v2020
    %v2022 = vrot.slane %v2021, 1
    %v2023 = vadd.f32 %v2021, %v2022
    %v2024 = vsel %vm431, %v1812, 0.0
    %v2025 = vrot.slane %v2024, 4
    %v2026 = vadd.f32 %v2024, %v2025
    %v2027 = vrot.slane %v2026, 2
    %v2028 = vadd.f32 %v2026, %v2027
    %v2029 = vrot.slane %v2028, 1
    %v2030 = vadd.f32 %v2028, %v2029
    %v2031 = vsel %vm431, %v1813, 0.0
    %v2032 = vrot.slane %v2031, 4
    %v2033 = vadd.f32 %v2031, %v2032
    %v2034 = vrot.slane %v2033, 2
    %v2035 = vadd.f32 %v2033, %v2034
    %v2036 = vrot.slane %v2035, 1
    %v2037 = vadd.f32 %v2035, %v2036
    %v2038 = vld [vmem:[%s5] sm:$0xff]
    %v2047 = vsel %vm1338, %v1827, %v1820
    %v2048 = vsel %vm1340, %v1834, %v2047
    %v2049 = vsel %vm1342, %v1841, %v2048
    %v2050 = vsel %vm1344, %v1848, %v2049
    %v2051 = vsel %vm1346, %v1855, %v2050
    %v2052 = vsel %vm1348, %v1862, %v2051
    %v2053 = vsel %vm1350, %v1869, %v2052
    %v2055 = vadd.f32 %v2038, %v2053
    %v2064 = vsel %vm1338, %v1883, %v1876
    %v2065 = vsel %vm1340, %v1890, %v2064
    %v2066 = vsel %vm1342, %v1897, %v2065
    %v2067 = vsel %vm1344, %v1904, %v2066
    %v2068 = vsel %vm1346, %v1911, %v2067
    %v2069 = vsel %vm1348, %v1918, %v2068
    %v2070 = vsel %vm1350, %v1925, %v2069
    %v2072 = vadd.f32 %v2055, %v2070
    %v2073 = vld [vmem:[%s6] sm:$0xff]
    %v2082 = vsel %vm1338, %v1939, %v1932
    %v2083 = vsel %vm1340, %v1946, %v2082
    %v2084 = vsel %vm1342, %v1953, %v2083
    %v2085 = vsel %vm1344, %v1960, %v2084
    %v2086 = vsel %vm1346, %v1967, %v2085
    %v2087 = vsel %vm1348, %v1974, %v2086
    %v2088 = vsel %vm1350, %v1981, %v2087
    %v2090 = vadd.f32 %v2073, %v2088
    %v2099 = vsel %vm1338, %v1995, %v1988
    %v2100 = vsel %vm1340, %v2002, %v2099
    %v2101 = vsel %vm1342, %v2009, %v2100
    %v2102 = vsel %vm1344, %v2016, %v2101
    %v2103 = vsel %vm1346, %v2023, %v2102
    %v2104 = vsel %vm1348, %v2030, %v2103
    %v2105 = vsel %vm1350, %v2037, %v2104
    %v2107 = vadd.f32 %v2090, %v2105
    %2108 = vxpose.xlu0.b32.start [1/16] %v2072, 128
    %2109 = vxpose.xlu0.b32.cont [2/16] 0.0, 128
    %2110 = vxpose.xlu0.b32.cont [3/16] 0.0, 128
    %2111 = vxpose.xlu0.b32.cont [4/16] 0.0, 128
    %2112 = vxpose.xlu0.b32.cont [5/16] 0.0, 128
    %2113 = vxpose.xlu0.b32.cont [6/16] 0.0, 128
    %2114 = vxpose.xlu0.b32.cont [7/16] 0.0, 128
    %2115 = vxpose.xlu0.b32.cont [8/16] 0.0, 128
    %2116 = vxpose.xlu0.b32.cont [9/16] 0.0, 128
    %2117 = vxpose.xlu0.b32.cont [10/16] 0.0, 128
    %2118 = vxpose.xlu0.b32.cont [11/16] 0.0, 128
    %2119 = vxpose.xlu0.b32.cont [12/16] 0.0, 128
    %2120 = vxpose.xlu0.b32.cont [13/16] 0.0, 128
    %2121 = vxpose.xlu0.b32.cont [14/16] 0.0, 128
    %2122 = vxpose.xlu0.b32.cont [15/16] 0.0, 128
    %2123 = vxpose.xlu0.b32.end [16/16] 0.0, 128
    %v2124 = vpop.trf.xlu0
    %v2125 = vpop.trf.xlu0
    %v2126 = vpop.trf.xlu0
    %v2127 = vpop.trf.xlu0
    %v2128 = vpop.trf.xlu0
    %v2129 = vpop.trf.xlu0
    %v2130 = vpop.trf.xlu0
    %v2131 = vpop.trf.xlu0
    %v2132 = vpop.trf.xlu0
    %v2133 = vpop.trf.xlu0
    %v2134 = vpop.trf.xlu0
    %v2135 = vpop.trf.xlu0
    %v2136 = vpop.trf.xlu0
    %v2137 = vpop.trf.xlu0
    %v2138 = vpop.trf.xlu0
    %v2139 = vpop.trf.xlu0
    %2140 = vxpose.xlu0.b32.start [1/16] %v2107, 128
    %2141 = vxpose.xlu0.b32.cont [2/16] 0.0, 128
    %2142 = vxpose.xlu0.b32.cont [3/16] 0.0, 128
    %2143 = vxpose.xlu0.b32.cont [4/16] 0.0, 128
    %2144 = vxpose.xlu0.b32.cont [5/16] 0.0, 128
    %2145 = vxpose.xlu0.b32.cont [6/16] 0.0, 128
    %2146 = vxpose.xlu0.b32.cont [7/16] 0.0, 128
    %2147 = vxpose.xlu0.b32.cont [8/16] 0.0, 128
    %2148 = vxpose.xlu0.b32.cont [9/16] 0.0, 128
    %2149 = vxpose.xlu0.b32.cont [10/16] 0.0, 128
    %2150 = vxpose.xlu0.b32.cont [11/16] 0.0, 128
    %2151 = vxpose.xlu0.b32.cont [12/16] 0.0, 128
    %2152 = vxpose.xlu0.b32.cont [13/16] 0.0, 128
    %2153 = vxpose.xlu0.b32.cont [14/16] 0.0, 128
    %2154 = vxpose.xlu0.b32.cont [15/16] 0.0, 128
    %2155 = vxpose.xlu0.b32.end [16/16] 0.0, 128
    %v2156 = vpop.trf.xlu0
    %v2157 = vpop.trf.xlu0
    %v2158 = vpop.trf.xlu0
    %v2159 = vpop.trf.xlu0
    %v2160 = vpop.trf.xlu0
    %v2161 = vpop.trf.xlu0
    %v2162 = vpop.trf.xlu0
    %v2163 = vpop.trf.xlu0
    %v2164 = vpop.trf.xlu0
    %v2165 = vpop.trf.xlu0
    %v2166 = vpop.trf.xlu0
    %v2167 = vpop.trf.xlu0
    %v2168 = vpop.trf.xlu0
    %v2169 = vpop.trf.xlu0
    %v2170 = vpop.trf.xlu0
    %v2171 = vpop.trf.xlu0
    %v2172 = vmul.f32 %v2124, %v2156
    %v2173 = vmul.f32 %v2125, %v2157
    %v2174 = vmul.f32 %v2126, %v2158
    %v2175 = vmul.f32 %v2127, %v2159
    %v2176 = vsel %vm1377, %v2172, 0.0
    %v2177 = vsel %vm1377, %v2173, 0.0
    %v2178 = vadd.f32 %v2176, %v2177
    %v2179 = vsel %vm1377, %v2174, 0.0
    %v2180 = vadd.f32 %v2178, %v2179
    %v2181 = vsel %vm1377, %v2175, 0.0
    %v2182 = vadd.f32 %v2180, %v2181
    %v2183 = vrot.slane %v2182, 4
    %v2184 = vadd.f32 %v2182, %v2183
    %v2185 = vrot.slane %v2184, 2
    %v2186 = vadd.f32 %v2184, %v2185
    %v2187 = vrot.slane %v2186, 1
    %v2188 = vadd.f32 %v2186, %v2187
    %v2189 = vxor.u32 %v2188, 2147483648
    %v2190 = vmul.f32 %v2189, 1.442695
    %v2191 = vpow.pop %v2190
    %v2192 = vadd.f32 %v2191, 1.0
    %v2193 = vrcp.pop %v2192
    %v2194 = vmul.f32 1.0, %v2193
    %vm2195 = vcmask 57344
    %2196 = vst.msk [vmem:[#allocation2] sm:$0x1] %vm2195, %v2194
    %v2197 = vld [vmem:[%s7] sm:$0x1]
    %v2198 = vlog2.pop %v2194
    %v2199 = vmul.f32 %v2198, 0.6931472
    %v2200 = vmax.f32 %v2199, -100.0
    %v2201 = vsub.f32 1.0, %v2194
    %v2202 = vlog2.pop %v2201
    %v2203 = vmul.f32 %v2202, 0.6931472
    %v2204 = vmax.f32 %v2203, -100.0
    %v2205 = vmul.f32 %v2197, %v2200
    %v2206 = vsub.f32 1.0, %v2197
    %v2207 = vmul.f32 %v2206, %v2204
    %v2208 = vadd.f32 %v2205, %v2207
    %v2209 = vsub.f32 0.0, %v2208
    %v2210 = vsel %vm2195, %v2209, 0.0
    %2211 = vadd.xlane.f32.xlu0 %v2210
    %v2212 = vpop.xlane.xlu0 %2211
    %v2213 = vrcp.pop 8.0
    %v2214 = vmul.f32 %v2212, %v2213
    %vm2215 = vcmask 0
    %2216 = vst.msk [vmem:[#allocation4] sm:$0x1] %vm2215, %v2214
    // Predicated region
    $region34: #{ckan_forward.1} parent=1 // pred_check
      _
    $region35: #{ckan_forward.1} parent=1 // pred_check_branch
      %2218 = sbr.rel (0) target = $region37
    $region36: #{ckan_forward.1} parent=1 // pred_region
      %s2220 = ssub.s32 16, 16
      %2221 = vsyncadd [#allocation3], %s2220
      %s2223 = sshll.u32 [#allocation2], 4
      %s2224 = int_to_ptr.vmem [resolvable:$true] %s2223
      %2226 = dma.vmem_to_hbm [thread:$0]  %s2224, 16, %s8, [#allocation3]
    $region37: #{ckan_forward.1} parent=1 // pred_fallthru
      _
    // Predicated region
    $region38: #{ckan_forward.1} parent=1 // pred_check
      _
    $region39: #{ckan_forward.1} parent=1 // pred_check_branch
      %2228 = sbr.rel (0) target = $region41
    $region40: #{ckan_forward.1} parent=1 // pred_region
      %s2230 = ssub.s32 16, 16
      %2231 = vsyncadd [#allocation5], %s2230
      %s2233 = sshll.u32 [#allocation4], 4
      %s2234 = int_to_ptr.vmem [resolvable:$true] %s2233
      %2236 = dma.vmem_to_hbm [thread:$0]  %s2234, 16, %s9, [#allocation5]
    $region41: #{ckan_forward.1} parent=1 // pred_fallthru
      _
    // Predicated region
    $region42: #{ckan_forward.1} parent=1 // pred_check
      _
    $region43: #{ckan_forward.1} parent=1 // pred_check_branch
      %2238 = sbr.rel (0) target = $region45
    $region44: #{ckan_forward.1} parent=1 // pred_region
      %2239 = dma.done [#allocation3], 16
    $region45: #{ckan_forward.1} parent=1 // pred_fallthru
      _
    // Predicated region
    $region46: #{ckan_forward.1} parent=1 // pred_check
      _
    $region47: #{ckan_forward.1} parent=1 // pred_check_branch
      %2241 = sbr.rel (0) target = $region49
    $region48: #{ckan_forward.1} parent=1 // pred_region
      %2242 = dma.done [#allocation5], 16
    $region49: #{ckan_forward.1} parent=1 // pred_fallthru
      _
    %2243 = vsyncpa [#allocation3], 1
    %2244 = vsyncpa [#allocation5], 1

</llo_original>
